<compile_context>
chip_gen: v7x
topology: tpu7x:2x2x1
jax: 0.10.0
libtpu: 0.0.40
codegen_flags: <defaults>
</compile_context>

<pallas_src>
import functools

import jax
import jax.numpy as jnp
from jax import lax
from jax.experimental import pallas as pl
from jax.experimental.pallas import tpu as pltpu


def _round_up(x, m):
    return (x + m - 1) // m * m


# --------------------------------- kernel ---------------------------------
def _conv3x3_bn_relu(x_f32, m_ref, w_ref, b_ref, *, H, W):
    """3x3 "SAME" conv + folded-BN bias + ReLU on a lane-dense (Cin_pad, H*W) slab.

    x_f32: (Cin_pad, H*W) f32.
    w_ref: (M, 9*Cin_pad) bf16, BN scale already folded into the filters.
    b_ref: (M, 1) f32 folded-BN bias.
    m_ref: (9, H*W) f32 per-tap border-validity masks (1.0 / 0.0).
    Returns (M, H*W) f32.
    """
    hw = H * W
    taps = []
    for t in range(9):
        dy, dx = t // 3 - 1, t % 3 - 1
        s = dy * W + dx
        if s == 0:
            tap = x_f32                                  # centre tap, always valid
        else:
            # XLU lane rotation: roll(x, -s)[:, p] == x[:, (p + s) % hw]
            tap = pltpu.roll(x_f32, (-s) % hw, axis=1)
            tap = tap * m_ref[pl.ds(t, 1), :]            # zero the "SAME" border
        taps.append(tap.astype(jnp.bfloat16))            # bf16 MXU operand
    # im2col patch; taps stacked on 16-aligned sublanes -> single K=9*Cin
    # matmul with a lane-dense (M, H*W) f32 result.
    patch = jnp.concatenate(taps, axis=0)                # (9*Cin_pad, H*W) bf16
    y = jnp.dot(w_ref[...], patch, preferred_element_type=jnp.float32)
    return jnp.maximum(y + b_ref[...], 0.0)              # bias + ReLU (f32)


def _context_module_kernel(x_ref, m_ref, w_in_ref, w_ud_ref, w_dn2_ref,
                           b_in_ref, b_ud_ref, b_dn2_ref, o_ref,
                           *, H, W, split):
    conv = functools.partial(_conv3x3_bn_relu, m_ref=m_ref, H=H, W=W)

    x = x_ref[0].astype(jnp.float32)                     # (Cin_pad, H*W)
    h = conv(x, w_ref=w_in_ref, b_ref=b_in_ref)          # inconv

    # upconv & downconv consume the same h: one shared im2col patch, one
    # matmul with row-stacked weights, rows split afterwards.
    y_ud = conv(h, w_ref=w_ud_ref, b_ref=b_ud_ref)       # (split + Cmid_pad, H*W)
    up = y_ud[:split]                                    # upconv  -> rows [0, cw)
    dn = y_ud[split:]                                    # downconv (intermediate)

    dn2 = conv(dn, w_ref=w_dn2_ref, b_ref=b_dn2_ref)     # downconv2 -> rows [cw, 2cw)

    # up/dn2 occupy disjoint channel rows (exact zeros elsewhere: zero bf16
    # weight rows + zero bias + ReLU), so one add realizes torch.cat(dim=1).
    o_ref[0] = (up + dn2).astype(o_ref.dtype)


# --------------------------------- wrapper ---------------------------------
def _pack_conv(w_hwio, scale, bias, cin_pad, cout_pad, row_offset):
    """Repack a 3x3 conv + folded BN for the fused kernel.

    Returns:
      w_mat: (cout_pad, 9*cin_pad) bf16 -- BN scale folded into the filters;
             rows [row_offset, row_offset+Cout) hold the real filters
             (column index = tap*cin_pad + ci), zeros elsewhere.
      b:     (cout_pad, 1) f32 -- folded-BN bias; zeros in padded rows so
             padded / unused channels stay exactly 0 after ReLU (this keeps
             the add-as-concat trick exact).
    """
    kh, kw, cin, cout = w_hwio.shape
    w = w_hwio.astype(jnp.float32) * scale.astype(jnp.float32)[None, None, None, :]
    w = jnp.pad(w, ((0, 0), (0, 0), (0, cin_pad - cin), (0, 0)))
    w = w.reshape(kh * kw * cin_pad, cout).T                      # (Cout, 9*cin_pad)
    w_mat = jnp.zeros((cout_pad, kh * kw * cin_pad), jnp.float32)
    w_mat = w_mat.at[row_offset:row_offset + cout, :].set(w)
    b = jnp.zeros((cout_pad, 1), jnp.float32)
    b = b.at[row_offset:row_offset + cout, 0].set(bias.astype(jnp.float32))
    return w_mat.astype(jnp.bfloat16), b


def _border_masks(H, W):
    """(9, H*W) f32: 1.0 where tap (dy,dx) reads inside the image, else 0.0."""
    row = jnp.arange(H, dtype=jnp.int32)[:, None]
    col = jnp.arange(W, dtype=jnp.int32)[None, :]
    ms = []
    for t in range(9):
        dy, dx = t // 3 - 1, t % 3 - 1
        valid = ((row + dy >= 0) & (row + dy < H) &
                 (col + dx >= 0) & (col + dx < W))
        ms.append(valid.reshape(-1))
    return jnp.stack(ms, axis=0).astype(jnp.float32)


@jax.jit
def context_module_forward(x_nchw, params):
    """ContextModule.forward.  Input/output are NCHW (PyTorch convention)."""
    B, cin, H, W = x_nchw.shape
    cw = params["inconv"]["w"].shape[-1]       # block_wide
    hw = H * W

    # bf16 sublane packing -> pad channel dims to multiples of 16.
    cin_p = _round_up(cin, 16)
    cmid_p = _round_up(cw, 16)                 # padded width of h / down
    cout_p = _round_up(2 * cw, 16)             # padded width of up / down2 / out

    # Free reshape (NCHW is already channel-major, spatial-minor).
    x_flat = x_nchw.reshape(B, cin, hw)
    if cin_p != cin:
        x_flat = jnp.pad(x_flat, ((0, 0), (0, cin_p - cin), (0, 0)))

    masks = _border_masks(H, W)                # resident per-tap border masks

    w_in, b_in = _pack_conv(params["inconv"]["w"], params["inconv"]["scale"],
                            params["inconv"]["bias"], cin_p, cmid_p, 0)
    w_up, b_up = _pack_conv(params["upconv"]["w"], params["upconv"]["scale"],
                            params["upconv"]["bias"], cmid_p, cout_p, 0)
    w_dn, b_dn = _pack_conv(params["downconv"]["w"], params["downconv"]["scale"],
                            params["downconv"]["bias"], cmid_p, cmid_p, 0)
    w_dn2, b_dn2 = _pack_conv(params["downconv2"]["w"], params["downconv2"]["scale"],
                              params["downconv2"]["bias"], cmid_p, cout_p, cw)

    # upconv & downconv both consume h: stack their weights/biases along the
    # output-row (M) axis so the kernel builds h's patch once, one matmul.
    w_ud = jnp.concatenate([w_up, w_dn], axis=0)      # (cout_p + cmid_p, 9*cmid_p)
    b_ud = jnp.concatenate([b_up, b_dn], axis=0)      # (cout_p + cmid_p, 1)

    out_flat = pl.pallas_call(
        functools.partial(_context_module_kernel, H=H, W=W, split=cout_p),
        out_shape=jax.ShapeDtypeStruct((B, cout_p, hw), x_nchw.dtype),
        grid_spec=pltpu.PrefetchScalarGridSpec(
            num_scalar_prefetch=0,
            grid=(B,),
            in_specs=[
                pl.BlockSpec((1, cin_p, hw), lambda b: (b, 0, 0)),
                pl.BlockSpec((9, hw), lambda b: (0, 0)),
                pl.BlockSpec((cmid_p, 9 * cin_p), lambda b: (0, 0)),
                pl.BlockSpec((cout_p + cmid_p, 9 * cmid_p), lambda b: (0, 0)),
                pl.BlockSpec((cout_p, 9 * cmid_p), lambda b: (0, 0)),
                pl.BlockSpec((cmid_p, 1), lambda b: (0, 0)),
                pl.BlockSpec((cout_p + cmid_p, 1), lambda b: (0, 0)),
                pl.BlockSpec((cout_p, 1), lambda b: (0, 0)),
            ],
            out_specs=pl.BlockSpec((1, cout_p, hw), lambda b: (b, 0, 0)),
        ),
        compiler_params=pltpu.CompilerParams(
            dimension_semantics=("parallel",)),   # batch axis -> both TCs on v7x
    )(x_flat, masks, w_in, w_ud, w_dn2, b_in, b_ud, b_dn2)

    out = out_flat if cout_p == 2 * cw else out_flat[:, :2 * cw]
    return out.reshape(B, 2 * cw, H, W)


# ------------------------------ params / init ------------------------------
def _fold_bn(gamma, beta, running_mean, running_var, eps=1e-5):
    scale = gamma / jnp.sqrt(running_var + eps)
    bias = beta - running_mean * scale
    return scale, bias


def _init_cba_params(key, cin, cout):
    kw, kg, kb = jax.random.split(key, 3)
    w = jax.random.normal(kw, (3, 3, cin, cout), jnp.float32) * 0.1  # HWIO
    gamma = jax.random.uniform(kg, (cout,), jnp.float32, 0.5, 1.5)
    beta = jax.random.normal(kb, (cout,), jnp.float32) * 0.1
    running_mean = jnp.zeros((cout,), jnp.float32)
    running_var = jnp.ones((cout,), jnp.float32)
    scale, bias = _fold_bn(gamma, beta, running_mean, running_var)
    return dict(w=w, scale=scale, bias=bias)


def init_context_module_params(key, in_channels):
    block_wide = in_channels // 4
    k0, k1, k2, k3 = jax.random.split(key, 4)
    return dict(
        inconv=_init_cba_params(k0, in_channels, block_wide),
        upconv=_init_cba_params(k1, block_wide, block_wide),
        downconv=_init_cba_params(k2, block_wide, block_wide),
        downconv2=_init_cba_params(k3, block_wide, block_wide),
    )


# ---------------------- pure-JAX reference (for checking) ----------------------
def _cba_ref(x_nhwc, w_hwio, scale, bias):
    y = lax.conv_general_dilated(
        x_nhwc, w_hwio, window_strides=(1, 1), padding="SAME",
        dimension_numbers=("NHWC", "HWIO", "NHWC"))
    y = y * scale + bias
    return jnp.maximum(y, 0.0)


def context_module_ref(x_nchw, params):
    x = jnp.transpose(x_nchw, (0, 2, 3, 1))
    p = params["inconv"]
    h = _cba_ref(x, p["w"], p["scale"], p["bias"])
    p = params["upconv"]
    up = _cba_ref(h, p["w"], p["scale"], p["bias"])
    p = params["downconv"]
    down = _cba_ref(h, p["w"], p["scale"], p["bias"])
    p = params["downconv2"]
    down = _cba_ref(down, p["w"], p["scale"], p["bias"])
    out = jnp.concatenate([up, down], axis=-1)
    return jnp.transpose(out, (0, 3, 1, 2))


if __name__ == "__main__":
    key = jax.random.PRNGKey(0)
    k_x, k_p = jax.random.split(key)

    B, C_in, H, W = 2, 16, 16, 16  # ContextModule: block_wide = C_in // 4 = 4
    x = jax.random.normal(k_x, (B, C_in, H, W), jnp.float32)
    params = init_context_module_params(k_p, C_in)

    out = jax.block_until_ready(context_module_forward(x, params))

    expected_shape = (B, 2 * (C_in // 4), H, W)
    assert out.shape == expected_shape, (out.shape, expected_shape)

    ref = jax.block_until_ready(context_module_ref(x, params))
    # bf16 MXU operands with f32 accumulation -> loosened parity tolerance
    # vs. the f32 reference.
    assert jnp.allclose(out, ref, rtol=5e-2, atol=5e-2), (
        float(jnp.max(jnp.abs(out - ref))))

    print("KERNEL_OK")
</pallas_src>

<mosaic_0001>
module attributes {stable_mosaic.version = 11 : i64} {
  func.func @_context_module_kernel(%arg0: i32, %arg1: memref<1x16x256xf32, #tpu.memory_space<vmem>>, %arg2: memref<9x256xf32, #tpu.memory_space<vmem>>, %arg3: memref<16x144xbf16, #tpu.memory_space<vmem>>, %arg4: memref<32x144xbf16, #tpu.memory_space<vmem>>, %arg5: memref<16x144xbf16, #tpu.memory_space<vmem>>, %arg6: memref<16x1xf32, #tpu.memory_space<vmem>>, %arg7: memref<32x1xf32, #tpu.memory_space<vmem>>, %arg8: memref<16x1xf32, #tpu.memory_space<vmem>>, %arg9: memref<1x16x256xf32, #tpu.memory_space<vmem>>) attributes {dimension_semantics = [#tpu.dimension_semantics<parallel>], iteration_bounds = array<i64: 2>, scalar_prefetch = 0 : i64, scratch_operands = 0 : i64, tpu.core_type = #tpu.core_type<tc>, window_params = [{transform_indices = @transform_0, window_bounds = array<i64: 1, 16, 256>}, {pipeline_mode = #tpu.pipeline_mode<synchronous>, transform_indices = @transform_1, window_bounds = array<i64: 9, 256>}, {pipeline_mode = #tpu.pipeline_mode<synchronous>, transform_indices = @transform_2, window_bounds = array<i64: 16, 144>}, {pipeline_mode = #tpu.pipeline_mode<synchronous>, transform_indices = @transform_3, window_bounds = array<i64: 32, 144>}, {pipeline_mode = #tpu.pipeline_mode<synchronous>, transform_indices = @transform_4, window_bounds = array<i64: 16, 144>}, {pipeline_mode = #tpu.pipeline_mode<synchronous>, transform_indices = @transform_5, window_bounds = array<i64: 16, 1>}, {pipeline_mode = #tpu.pipeline_mode<synchronous>, transform_indices = @transform_6, window_bounds = array<i64: 32, 1>}, {pipeline_mode = #tpu.pipeline_mode<synchronous>, transform_indices = @transform_7, window_bounds = array<i64: 16, 1>}, {transform_indices = @transform_8, window_bounds = array<i64: 1, 16, 256>}]} {
    %c0 = arith.constant 0 : index
    %c0_0 = arith.constant 0 : index
    %c0_1 = arith.constant 0 : index
    %0 = vector.load %arg1[%c0, %c0_0, %c0_1] : memref<1x16x256xf32, #tpu.memory_space<vmem>>, vector<1x16x256xf32>
    %1 = vector.shape_cast %0 : vector<1x16x256xf32> to vector<16x256xf32>
    %c17_i32 = arith.constant 17 : i32
    %2 = tpu.dynamic_rotate %1 by %c17_i32 dim 1 : vector<16x256xf32>, i32 -> vector<16x256xf32>
    %c0_2 = arith.constant 0 : index
    %c0_3 = arith.constant 0 : index
    %3 = vector.load %arg2[%c0_2, %c0_3] : memref<9x256xf32, #tpu.memory_space<vmem>>, vector<1x256xf32>
    %4 = vector.broadcast %3 : vector<1x256xf32> to vector<16x256xf32>
    %5 = arith.mulf %2, %4 : vector<16x256xf32>
    %6 = arith.truncf %5 : vector<16x256xf32> to vector<16x256xbf16>
    %c16_i32 = arith.constant 16 : i32
    %7 = tpu.dynamic_rotate %1 by %c16_i32 dim 1 : vector<16x256xf32>, i32 -> vector<16x256xf32>
    %c1 = arith.constant 1 : index
    %c0_4 = arith.constant 0 : index
    %8 = vector.load %arg2[%c1, %c0_4] : memref<9x256xf32, #tpu.memory_space<vmem>>, vector<1x256xf32>
    %9 = vector.broadcast %8 : vector<1x256xf32> to vector<16x256xf32>
    %10 = arith.mulf %7, %9 : vector<16x256xf32>
    %11 = arith.truncf %10 : vector<16x256xf32> to vector<16x256xbf16>
    %c15_i32 = arith.constant 15 : i32
    %12 = tpu.dynamic_rotate %1 by %c15_i32 dim 1 : vector<16x256xf32>, i32 -> vector<16x256xf32>
    %c2 = arith.constant 2 : index
    %c0_5 = arith.constant 0 : index
    %13 = vector.load %arg2[%c2, %c0_5] : memref<9x256xf32, #tpu.memory_space<vmem>>, vector<1x256xf32>
    %14 = vector.broadcast %13 : vector<1x256xf32> to vector<16x256xf32>
    %15 = arith.mulf %12, %14 : vector<16x256xf32>
    %16 = arith.truncf %15 : vector<16x256xf32> to vector<16x256xbf16>
    %c1_i32 = arith.constant 1 : i32
    %17 = tpu.dynamic_rotate %1 by %c1_i32 dim 1 : vector<16x256xf32>, i32 -> vector<16x256xf32>
    %c3 = arith.constant 3 : index
    %c0_6 = arith.constant 0 : index
    %18 = vector.load %arg2[%c3, %c0_6] : memref<9x256xf32, #tpu.memory_space<vmem>>, vector<1x256xf32>
    %19 = vector.broadcast %18 : vector<1x256xf32> to vector<16x256xf32>
    %20 = arith.mulf %17, %19 : vector<16x256xf32>
    %21 = arith.truncf %20 : vector<16x256xf32> to vector<16x256xbf16>
    %22 = arith.truncf %1 : vector<16x256xf32> to vector<16x256xbf16>
    %c255_i32 = arith.constant 255 : i32
    %23 = tpu.dynamic_rotate %1 by %c255_i32 dim 1 : vector<16x256xf32>, i32 -> vector<16x256xf32>
    %c5 = arith.constant 5 : index
    %c0_7 = arith.constant 0 : index
    %24 = vector.load %arg2[%c5, %c0_7] : memref<9x256xf32, #tpu.memory_space<vmem>>, vector<1x256xf32>
    %25 = vector.broadcast %24 : vector<1x256xf32> to vector<16x256xf32>
    %26 = arith.mulf %23, %25 : vector<16x256xf32>
    %27 = arith.truncf %26 : vector<16x256xf32> to vector<16x256xbf16>
    %c241_i32 = arith.constant 241 : i32
    %28 = tpu.dynamic_rotate %1 by %c241_i32 dim 1 : vector<16x256xf32>, i32 -> vector<16x256xf32>
    %c6 = arith.constant 6 : index
    %c0_8 = arith.constant 0 : index
    %29 = vector.load %arg2[%c6, %c0_8] : memref<9x256xf32, #tpu.memory_space<vmem>>, vector<1x256xf32>
    %30 = vector.broadcast %29 : vector<1x256xf32> to vector<16x256xf32>
    %31 = arith.mulf %28, %30 : vector<16x256xf32>
    %32 = arith.truncf %31 : vector<16x256xf32> to vector<16x256xbf16>
    %c240_i32 = arith.constant 240 : i32
    %33 = tpu.dynamic_rotate %1 by %c240_i32 dim 1 : vector<16x256xf32>, i32 -> vector<16x256xf32>
    %c7 = arith.constant 7 : index
    %c0_9 = arith.constant 0 : index
    %34 = vector.load %arg2[%c7, %c0_9] : memref<9x256xf32, #tpu.memory_space<vmem>>, vector<1x256xf32>
    %35 = vector.broadcast %34 : vector<1x256xf32> to vector<16x256xf32>
    %36 = arith.mulf %33, %35 : vector<16x256xf32>
    %37 = arith.truncf %36 : vector<16x256xf32> to vector<16x256xbf16>
    %c239_i32 = arith.constant 239 : i32
    %38 = tpu.dynamic_rotate %1 by %c239_i32 dim 1 : vector<16x256xf32>, i32 -> vector<16x256xf32>
    %c8 = arith.constant 8 : index
    %c0_10 = arith.constant 0 : index
    %39 = vector.load %arg2[%c8, %c0_10] : memref<9x256xf32, #tpu.memory_space<vmem>>, vector<1x256xf32>
    %40 = vector.broadcast %39 : vector<1x256xf32> to vector<16x256xf32>
    %41 = arith.mulf %38, %40 : vector<16x256xf32>
    %42 = arith.truncf %41 : vector<16x256xf32> to vector<16x256xbf16>
    %43 = tpu.concatenate %6, %11, %16, %21, %22, %27, %32, %37, %42 in 0 : vector<16x256xbf16>, vector<16x256xbf16>, vector<16x256xbf16>, vector<16x256xbf16>, vector<16x256xbf16>, vector<16x256xbf16>, vector<16x256xbf16>, vector<16x256xbf16>, vector<16x256xbf16> -> vector<144x256xbf16>
    %c0_11 = arith.constant 0 : index
    %c0_12 = arith.constant 0 : index
    %44 = vector.load %arg3[%c0_11, %c0_12] : memref<16x144xbf16, #tpu.memory_space<vmem>>, vector<16x144xbf16>
    %cst = arith.constant dense<0.000000e+00> : vector<16x256xf32>
    %45 = tpu.matmul %44, %43, %cst {dimension_numbers = #tpu.dot_dimension_numbers<[1], [0], [0], [1], [0, 0, 1, 1], [], []>} : vector<16x144xbf16>, vector<144x256xbf16>, vector<16x256xf32> -> vector<16x256xf32>
    %c0_13 = arith.constant 0 : index
    %c0_14 = arith.constant 0 : index
    %46 = vector.load %arg6[%c0_13, %c0_14] : memref<16x1xf32, #tpu.memory_space<vmem>>, vector<16x1xf32>
    %47 = vector.broadcast %46 : vector<16x1xf32> to vector<16x256xf32>
    %48 = arith.addf %45, %47 : vector<16x256xf32>
    %cst_15 = arith.constant 0.000000e+00 : f32
    %49 = vector.broadcast %cst_15 : f32 to vector<16x256xf32>
    %50 = arith.maximumf %48, %49 : vector<16x256xf32>
    %c17_i32_16 = arith.constant 17 : i32
    %51 = tpu.dynamic_rotate %50 by %c17_i32_16 dim 1 : vector<16x256xf32>, i32 -> vector<16x256xf32>
    %c0_17 = arith.constant 0 : index
    %c0_18 = arith.constant 0 : index
    %52 = vector.load %arg2[%c0_17, %c0_18] : memref<9x256xf32, #tpu.memory_space<vmem>>, vector<1x256xf32>
    %53 = vector.broadcast %52 : vector<1x256xf32> to vector<16x256xf32>
    %54 = arith.mulf %51, %53 : vector<16x256xf32>
    %55 = arith.truncf %54 : vector<16x256xf32> to vector<16x256xbf16>
    %c16_i32_19 = arith.constant 16 : i32
    %56 = tpu.dynamic_rotate %50 by %c16_i32_19 dim 1 : vector<16x256xf32>, i32 -> vector<16x256xf32>
    %c1_20 = arith.constant 1 : index
    %c0_21 = arith.constant 0 : index
    %57 = vector.load %arg2[%c1_20, %c0_21] : memref<9x256xf32, #tpu.memory_space<vmem>>, vector<1x256xf32>
    %58 = vector.broadcast %57 : vector<1x256xf32> to vector<16x256xf32>
    %59 = arith.mulf %56, %58 : vector<16x256xf32>
    %60 = arith.truncf %59 : vector<16x256xf32> to vector<16x256xbf16>
    %c15_i32_22 = arith.constant 15 : i32
    %61 = tpu.dynamic_rotate %50 by %c15_i32_22 dim 1 : vector<16x256xf32>, i32 -> vector<16x256xf32>
    %c2_23 = arith.constant 2 : index
    %c0_24 = arith.constant 0 : index
    %62 = vector.load %arg2[%c2_23, %c0_24] : memref<9x256xf32, #tpu.memory_space<vmem>>, vector<1x256xf32>
    %63 = vector.broadcast %62 : vector<1x256xf32> to vector<16x256xf32>
    %64 = arith.mulf %61, %63 : vector<16x256xf32>
    %65 = arith.truncf %64 : vector<16x256xf32> to vector<16x256xbf16>
    %c1_i32_25 = arith.constant 1 : i32
    %66 = tpu.dynamic_rotate %50 by %c1_i32_25 dim 1 : vector<16x256xf32>, i32 -> vector<16x256xf32>
    %c3_26 = arith.constant 3 : index
    %c0_27 = arith.constant 0 : index
    %67 = vector.load %arg2[%c3_26, %c0_27] : memref<9x256xf32, #tpu.memory_space<vmem>>, vector<1x256xf32>
    %68 = vector.broadcast %67 : vector<1x256xf32> to vector<16x256xf32>
    %69 = arith.mulf %66, %68 : vector<16x256xf32>
    %70 = arith.truncf %69 : vector<16x256xf32> to vector<16x256xbf16>
    %71 = arith.truncf %50 : vector<16x256xf32> to vector<16x256xbf16>
    %c255_i32_28 = arith.constant 255 : i32
    %72 = tpu.dynamic_rotate %50 by %c255_i32_28 dim 1 : vector<16x256xf32>, i32 -> vector<16x256xf32>
    %c5_29 = arith.constant 5 : index
    %c0_30 = arith.constant 0 : index
    %73 = vector.load %arg2[%c5_29, %c0_30] : memref<9x256xf32, #tpu.memory_space<vmem>>, vector<1x256xf32>
    %74 = vector.broadcast %73 : vector<1x256xf32> to vector<16x256xf32>
    %75 = arith.mulf %72, %74 : vector<16x256xf32>
    %76 = arith.truncf %75 : vector<16x256xf32> to vector<16x256xbf16>
    %c241_i32_31 = arith.constant 241 : i32
    %77 = tpu.dynamic_rotate %50 by %c241_i32_31 dim 1 : vector<16x256xf32>, i32 -> vector<16x256xf32>
    %c6_32 = arith.constant 6 : index
    %c0_33 = arith.constant 0 : index
    %78 = vector.load %arg2[%c6_32, %c0_33] : memref<9x256xf32, #tpu.memory_space<vmem>>, vector<1x256xf32>
    %79 = vector.broadcast %78 : vector<1x256xf32> to vector<16x256xf32>
    %80 = arith.mulf %77, %79 : vector<16x256xf32>
    %81 = arith.truncf %80 : vector<16x256xf32> to vector<16x256xbf16>
    %c240_i32_34 = arith.constant 240 : i32
    %82 = tpu.dynamic_rotate %50 by %c240_i32_34 dim 1 : vector<16x256xf32>, i32 -> vector<16x256xf32>
    %c7_35 = arith.constant 7 : index
    %c0_36 = arith.constant 0 : index
    %83 = vector.load %arg2[%c7_35, %c0_36] : memref<9x256xf32, #tpu.memory_space<vmem>>, vector<1x256xf32>
    %84 = vector.broadcast %83 : vector<1x256xf32> to vector<16x256xf32>
    %85 = arith.mulf %82, %84 : vector<16x256xf32>
    %86 = arith.truncf %85 : vector<16x256xf32> to vector<16x256xbf16>
    %c239_i32_37 = arith.constant 239 : i32
    %87 = tpu.dynamic_rotate %50 by %c239_i32_37 dim 1 : vector<16x256xf32>, i32 -> vector<16x256xf32>
    %c8_38 = arith.constant 8 : index
    %c0_39 = arith.constant 0 : index
    %88 = vector.load %arg2[%c8_38, %c0_39] : memref<9x256xf32, #tpu.memory_space<vmem>>, vector<1x256xf32>
    %89 = vector.broadcast %88 : vector<1x256xf32> to vector<16x256xf32>
    %90 = arith.mulf %87, %89 : vector<16x256xf32>
    %91 = arith.truncf %90 : vector<16x256xf32> to vector<16x256xbf16>
    %92 = tpu.concatenate %55, %60, %65, %70, %71, %76, %81, %86, %91 in 0 : vector<16x256xbf16>, vector<16x256xbf16>, vector<16x256xbf16>, vector<16x256xbf16>, vector<16x256xbf16>, vector<16x256xbf16>, vector<16x256xbf16>, vector<16x256xbf16>, vector<16x256xbf16> -> vector<144x256xbf16>
    %c0_40 = arith.constant 0 : index
    %c0_41 = arith.constant 0 : index
    %93 = vector.load %arg4[%c0_40, %c0_41] : memref<32x144xbf16, #tpu.memory_space<vmem>>, vector<32x144xbf16>
    %cst_42 = arith.constant dense<0.000000e+00> : vector<32x256xf32>
    %94 = tpu.matmul %93, %92, %cst_42 {dimension_numbers = #tpu.dot_dimension_numbers<[1], [0], [0], [1], [0, 0, 1, 1], [], []>} : vector<32x144xbf16>, vector<144x256xbf16>, vector<32x256xf32> -> vector<32x256xf32>
    %c0_43 = arith.constant 0 : index
    %c0_44 = arith.constant 0 : index
    %95 = vector.load %arg7[%c0_43, %c0_44] : memref<32x1xf32, #tpu.memory_space<vmem>>, vector<32x1xf32>
    %96 = vector.broadcast %95 : vector<32x1xf32> to vector<32x256xf32>
    %97 = arith.addf %94, %96 : vector<32x256xf32>
    %cst_45 = arith.constant 0.000000e+00 : f32
    %98 = vector.broadcast %cst_45 : f32 to vector<32x256xf32>
    %99 = arith.maximumf %97, %98 : vector<32x256xf32>
    %100 = vector.extract_strided_slice %99 {offsets = [0, 0], sizes = [16, 256], strides = [1, 1]} : vector<32x256xf32> to vector<16x256xf32>
    %101 = vector.extract_strided_slice %99 {offsets = [16, 0], sizes = [16, 256], strides = [1, 1]} : vector<32x256xf32> to vector<16x256xf32>
    %c17_i32_46 = arith.constant 17 : i32
    %102 = tpu.dynamic_rotate %101 by %c17_i32_46 dim 1 : vector<16x256xf32>, i32 -> vector<16x256xf32>
    %c0_47 = arith.constant 0 : index
    %c0_48 = arith.constant 0 : index
    %103 = vector.load %arg2[%c0_47, %c0_48] : memref<9x256xf32, #tpu.memory_space<vmem>>, vector<1x256xf32>
    %104 = vector.broadcast %103 : vector<1x256xf32> to vector<16x256xf32>
    %105 = arith.mulf %102, %104 : vector<16x256xf32>
    %106 = arith.truncf %105 : vector<16x256xf32> to vector<16x256xbf16>
    %c16_i32_49 = arith.constant 16 : i32
    %107 = tpu.dynamic_rotate %101 by %c16_i32_49 dim 1 : vector<16x256xf32>, i32 -> vector<16x256xf32>
    %c1_50 = arith.constant 1 : index
    %c0_51 = arith.constant 0 : index
    %108 = vector.load %arg2[%c1_50, %c0_51] : memref<9x256xf32, #tpu.memory_space<vmem>>, vector<1x256xf32>
    %109 = vector.broadcast %108 : vector<1x256xf32> to vector<16x256xf32>
    %110 = arith.mulf %107, %109 : vector<16x256xf32>
    %111 = arith.truncf %110 : vector<16x256xf32> to vector<16x256xbf16>
    %c15_i32_52 = arith.constant 15 : i32
    %112 = tpu.dynamic_rotate %101 by %c15_i32_52 dim 1 : vector<16x256xf32>, i32 -> vector<16x256xf32>
    %c2_53 = arith.constant 2 : index
    %c0_54 = arith.constant 0 : index
    %113 = vector.load %arg2[%c2_53, %c0_54] : memref<9x256xf32, #tpu.memory_space<vmem>>, vector<1x256xf32>
    %114 = vector.broadcast %113 : vector<1x256xf32> to vector<16x256xf32>
    %115 = arith.mulf %112, %114 : vector<16x256xf32>
    %116 = arith.truncf %115 : vector<16x256xf32> to vector<16x256xbf16>
    %c1_i32_55 = arith.constant 1 : i32
    %117 = tpu.dynamic_rotate %101 by %c1_i32_55 dim 1 : vector<16x256xf32>, i32 -> vector<16x256xf32>
    %c3_56 = arith.constant 3 : index
    %c0_57 = arith.constant 0 : index
    %118 = vector.load %arg2[%c3_56, %c0_57] : memref<9x256xf32, #tpu.memory_space<vmem>>, vector<1x256xf32>
    %119 = vector.broadcast %118 : vector<1x256xf32> to vector<16x256xf32>
    %120 = arith.mulf %117, %119 : vector<16x256xf32>
    %121 = arith.truncf %120 : vector<16x256xf32> to vector<16x256xbf16>
    %122 = arith.truncf %101 : vector<16x256xf32> to vector<16x256xbf16>
    %c255_i32_58 = arith.constant 255 : i32
    %123 = tpu.dynamic_rotate %101 by %c255_i32_58 dim 1 : vector<16x256xf32>, i32 -> vector<16x256xf32>
    %c5_59 = arith.constant 5 : index
    %c0_60 = arith.constant 0 : index
    %124 = vector.load %arg2[%c5_59, %c0_60] : memref<9x256xf32, #tpu.memory_space<vmem>>, vector<1x256xf32>
    %125 = vector.broadcast %124 : vector<1x256xf32> to vector<16x256xf32>
    %126 = arith.mulf %123, %125 : vector<16x256xf32>
    %127 = arith.truncf %126 : vector<16x256xf32> to vector<16x256xbf16>
    %c241_i32_61 = arith.constant 241 : i32
    %128 = tpu.dynamic_rotate %101 by %c241_i32_61 dim 1 : vector<16x256xf32>, i32 -> vector<16x256xf32>
    %c6_62 = arith.constant 6 : index
    %c0_63 = arith.constant 0 : index
    %129 = vector.load %arg2[%c6_62, %c0_63] : memref<9x256xf32, #tpu.memory_space<vmem>>, vector<1x256xf32>
    %130 = vector.broadcast %129 : vector<1x256xf32> to vector<16x256xf32>
    %131 = arith.mulf %128, %130 : vector<16x256xf32>
    %132 = arith.truncf %131 : vector<16x256xf32> to vector<16x256xbf16>
    %c240_i32_64 = arith.constant 240 : i32
    %133 = tpu.dynamic_rotate %101 by %c240_i32_64 dim 1 : vector<16x256xf32>, i32 -> vector<16x256xf32>
    %c7_65 = arith.constant 7 : index
    %c0_66 = arith.constant 0 : index
    %134 = vector.load %arg2[%c7_65, %c0_66] : memref<9x256xf32, #tpu.memory_space<vmem>>, vector<1x256xf32>
    %135 = vector.broadcast %134 : vector<1x256xf32> to vector<16x256xf32>
    %136 = arith.mulf %133, %135 : vector<16x256xf32>
    %137 = arith.truncf %136 : vector<16x256xf32> to vector<16x256xbf16>
    %c239_i32_67 = arith.constant 239 : i32
    %138 = tpu.dynamic_rotate %101 by %c239_i32_67 dim 1 : vector<16x256xf32>, i32 -> vector<16x256xf32>
    %c8_68 = arith.constant 8 : index
    %c0_69 = arith.constant 0 : index
    %139 = vector.load %arg2[%c8_68, %c0_69] : memref<9x256xf32, #tpu.memory_space<vmem>>, vector<1x256xf32>
    %140 = vector.broadcast %139 : vector<1x256xf32> to vector<16x256xf32>
    %141 = arith.mulf %138, %140 : vector<16x256xf32>
    %142 = arith.truncf %141 : vector<16x256xf32> to vector<16x256xbf16>
    %143 = tpu.concatenate %106, %111, %116, %121, %122, %127, %132, %137, %142 in 0 : vector<16x256xbf16>, vector<16x256xbf16>, vector<16x256xbf16>, vector<16x256xbf16>, vector<16x256xbf16>, vector<16x256xbf16>, vector<16x256xbf16>, vector<16x256xbf16>, vector<16x256xbf16> -> vector<144x256xbf16>
    %c0_70 = arith.constant 0 : index
    %c0_71 = arith.constant 0 : index
    %144 = vector.load %arg5[%c0_70, %c0_71] : memref<16x144xbf16, #tpu.memory_space<vmem>>, vector<16x144xbf16>
    %cst_72 = arith.constant dense<0.000000e+00> : vector<16x256xf32>
    %145 = tpu.matmul %144, %143, %cst_72 {dimension_numbers = #tpu.dot_dimension_numbers<[1], [0], [0], [1], [0, 0, 1, 1], [], []>} : vector<16x144xbf16>, vector<144x256xbf16>, vector<16x256xf32> -> vector<16x256xf32>
    %c0_73 = arith.constant 0 : index
    %c0_74 = arith.constant 0 : index
    %146 = vector.load %arg8[%c0_73, %c0_74] : memref<16x1xf32, #tpu.memory_space<vmem>>, vector<16x1xf32>
    %147 = vector.broadcast %146 : vector<16x1xf32> to vector<16x256xf32>
    %148 = arith.addf %145, %147 : vector<16x256xf32>
    %cst_75 = arith.constant 0.000000e+00 : f32
    %149 = vector.broadcast %cst_75 : f32 to vector<16x256xf32>
    %150 = arith.maximumf %148, %149 : vector<16x256xf32>
    %151 = arith.addf %100, %150 : vector<16x256xf32>
    %c0_76 = arith.constant 0 : index
    %c0_77 = arith.constant 0 : index
    %c0_78 = arith.constant 0 : index
    %152 = vector.load %arg9[%c0_76, %c0_77, %c0_78] : memref<1x16x256xf32, #tpu.memory_space<vmem>>, vector<1x16x256xf32>
    %153 = vector.shape_cast %152 : vector<1x16x256xf32> to vector<16x256xf32>
    %154 = vector.shape_cast %151 : vector<16x256xf32> to vector<1x16x256xf32>
    tpu.vector_store %arg9[%c0_76, %c0_77, %c0_78], %154 {strides = array<i32>} : memref<1x16x256xf32, #tpu.memory_space<vmem>>, vector<1x16x256xf32>,
    return
  }
  func.func @transform_0(%arg0: i32) -> (i32, i32, i32) {
    %c0_i32 = arith.constant 0 : i32
    %c0_i32_0 = arith.constant 0 : i32
    %c0_i32_1 = arith.constant 0 : i32
    return %arg0, %c0_i32, %c0_i32_0 : i32, i32, i32
  }
  func.func @transform_1(%arg0: i32) -> (i32, i32) {
    %c0_i32 = arith.constant 0 : i32
    %c0_i32_0 = arith.constant 0 : i32
    %c0_i32_1 = arith.constant 0 : i32
    return %c0_i32, %c0_i32_0 : i32, i32
  }
  func.func @transform_2(%arg0: i32) -> (i32, i32) {
    %c0_i32 = arith.constant 0 : i32
    %c0_i32_0 = arith.constant 0 : i32
    %c0_i32_1 = arith.constant 0 : i32
    return %c0_i32, %c0_i32_0 : i32, i32
  }
  func.func @transform_3(%arg0: i32) -> (i32, i32) {
    %c0_i32 = arith.constant 0 : i32
    %c0_i32_0 = arith.constant 0 : i32
    %c0_i32_1 = arith.constant 0 : i32
    return %c0_i32, %c0_i32_0 : i32, i32
  }
  func.func @transform_4(%arg0: i32) -> (i32, i32) {
    %c0_i32 = arith.constant 0 : i32
    %c0_i32_0 = arith.constant 0 : i32
    %c0_i32_1 = arith.constant 0 : i32
    return %c0_i32, %c0_i32_0 : i32, i32
  }
  func.func @transform_5(%arg0: i32) -> (i32, i32) {
    %c0_i32 = arith.constant 0 : i32
    %c0_i32_0 = arith.constant 0 : i32
    %c0_i32_1 = arith.constant 0 : i32
    return %c0_i32, %c0_i32_0 : i32, i32
  }
  func.func @transform_6(%arg0: i32) -> (i32, i32) {
    %c0_i32 = arith.constant 0 : i32
    %c0_i32_0 = arith.constant 0 : i32
    %c0_i32_1 = arith.constant 0 : i32
    return %c0_i32, %c0_i32_0 : i32, i32
  }
  func.func @transform_7(%arg0: i32) -> (i32, i32) {
    %c0_i32 = arith.constant 0 : i32
    %c0_i32_0 = arith.constant 0 : i32
    %c0_i32_1 = arith.constant 0 : i32
    return %c0_i32, %c0_i32_0 : i32, i32
  }
  func.func @transform_8(%arg0: i32) -> (i32, i32, i32) {
    %c0_i32 = arith.constant 0 : i32
    %c0_i32_0 = arith.constant 0 : i32
    %c0_i32_1 = arith.constant 0 : i32
    return %arg0, %c0_i32, %c0_i32_0 : i32, i32, i32
  }
}

</mosaic_0001>

<llo_original>
// kernel: context_module_forward.1
$region0: #{context_module_forward.1}
  #allocation0 [shape = 'u32[]', space=smem, size = 0x4, offset = 0x4, fixed_abs, tag = 'smem constant byte address 0x4 - core index']
  #allocation1 [shape = 'u32[144,128]{1,0:T(1,128)}', space=vmem, size = 0x12000, scoped, tag = 'internal scratch']
  %s0 = inlined_call_operand.vmem [shape: f32[2,16,256], index: 0, kind: input, shape index: {}]
  %s1 = inlined_call_operand.vmem [shape: f32[9,256], index: 1, kind: input, shape index: {}]
  %s2 = inlined_call_operand.vmem [shape: bf16[16,144], index: 2, kind: input, shape index: {}]
  %s3 = inlined_call_operand.vmem [shape: bf16[32,144], index: 3, kind: input, shape index: {}]
  %s4 = inlined_call_operand.vmem [shape: bf16[16,144], index: 4, kind: input, shape index: {}]
  %s5 = inlined_call_operand.vmem [shape: f32[16,1], index: 5, kind: input, shape index: {}]
  %s6 = inlined_call_operand.vmem [shape: f32[32,1], index: 6, kind: input, shape index: {}]
  %s7 = inlined_call_operand.vmem [shape: f32[16,1], index: 7, kind: input, shape index: {}]
  %s8 = inlined_call_operand.vmem [shape: f32[2,16,256], index: 8, kind: output, shape index: {}]
  %s9 = sld [smem:[#allocation0]]
  $region65: #{context_module_forward.1} parent=0
    _
  %s11 = ssub.s32 1, %s9
  %s12 = scalar_select 0, %s11, %s9
  loop: start=0, step=1, limit=4
  $region2: #{context_module_forward.1} parent=0 // loop_pre_header
    _
  $region3: #{context_module_forward.1} parent=0 // loop_header
    %s14 = sphi 0, %s18
    %p15 = scmp.ge.s32.totalorder %s14, 4
    %s24 = sphi 0, %s26
    %s27 = sphi 0, %s24
    %s28 = sphi 0, %s27
    %s44 = sphi 0, %s28
    %s48 = sphi 0, %s48
    %s50 = sphi 0, %s48
    %s51 = sphi 0, %s50
    %s65 = sphi 0, %s51
    %s69 = sphi 0, %s69
    %s71 = sphi 0, %s69
    %s72 = sphi 0, %s71
    %s86 = sphi 0, %s72
    %s90 = sphi 0, %s90
    %s92 = sphi 0, %s90
    %s93 = sphi 0, %s92
    %s107 = sphi 0, %s93
    %s111 = sphi 0, %s111
    %s113 = sphi 0, %s111
    %s114 = sphi 0, %s113
    %s128 = sphi 0, %s114
    %s132 = sphi 0, %s132
    %s134 = sphi 0, %s132
    %s135 = sphi 0, %s134
    %s149 = sphi 0, %s135
    %s153 = sphi 0, %s153
    %s155 = sphi 0, %s153
    %s156 = sphi 0, %s155
    %s170 = sphi 0, %s156
    %s174 = sphi 0, %s174
    %s176 = sphi 0, %s174
    %s177 = sphi 0, %s176
    %s191 = sphi 0, %s177
    %s197 = sphi 0, %s199
    %s200 = sphi 0, %s197
    %s201 = sphi 0, %s200
    %s217 = sphi 0, %s201
  $region4: #{context_module_forward.1} parent=0 // loop_header_branch
    %17 = sbr.rel (%p15) target = $region8
  $region5: #{context_module_forward.1} parent=0 // loop_body
    %s19 = ssub.s32 %s14, 1
    %s20 = ssub.s32 %s14, 2
    %s21 = sadd.s32 %s14, 1
    %s22 = ssub.s32 %s14, %s21
    %p23 = scmp.eq.s32.totalorder %s22, 0
    %s25 = sadd.s32 %s24, 1
    %s26 = scalar_select %p23, %s24, %s25
    %p29 = pneg %p23
    %p30 = scmp.eq.s32.totalorder %s14, 1
    %p31 = por %p29, %p30
    %p32 = scmp.ne.s32.totalorder %s24, %s27
    %p33 = scmp.eq.s32.totalorder %s14, 0
    %p34 = por %p32, %p33
    %p35 = scmp.ne.s32.totalorder %s24, %s27
    %p36 = scmp.eq.s32.totalorder %s19, 1
    %p37 = por %p35, %p36
    %p38 = scmp.ne.s32.totalorder %s27, %s28
    %p39 = scmp.eq.s32.totalorder %s19, 0
    %p40 = por %p38, %p39
    %p41 = scmp.ne.s32.totalorder %s27, %s28
    %p42 = scmp.eq.s32.totalorder %s20, 1
    %p43 = por %p41, %p42
    %p45 = scmp.ne.s32.totalorder %s28, %s44
    %p46 = scmp.eq.s32.totalorder %s20, 0
    %p47 = por %p45, %p46
    %s49 = sadd.s32 %s48, 1
    %p52 = scmp.eq.s32.totalorder %s14, 1
    %p53 = scmp.ne.s32.totalorder %s48, %s50
    %p54 = scmp.eq.s32.totalorder %s14, 0
    %p55 = por %p53, %p54
    %p56 = scmp.ne.s32.totalorder %s48, %s50
    %p57 = scmp.eq.s32.totalorder %s19, 1
    %p58 = por %p56, %p57
    %p59 = scmp.ne.s32.totalorder %s50, %s51
    %p60 = scmp.eq.s32.totalorder %s19, 0
    %p61 = por %p59, %p60
    %p62 = scmp.ne.s32.totalorder %s50, %s51
    %p63 = scmp.eq.s32.totalorder %s20, 1
    %p64 = por %p62, %p63
    %p66 = scmp.ne.s32.totalorder %s51, %s65
    %p67 = scmp.eq.s32.totalorder %s20, 0
    %p68 = por %p66, %p67
    %s70 = sadd.s32 %s69, 1
    %p73 = scmp.eq.s32.totalorder %s14, 1
    %p74 = scmp.ne.s32.totalorder %s69, %s71
    %p75 = scmp.eq.s32.totalorder %s14, 0
    %p76 = por %p74, %p75
    %p77 = scmp.ne.s32.totalorder %s69, %s71
    %p78 = scmp.eq.s32.totalorder %s19, 1
    %p79 = por %p77, %p78
    %p80 = scmp.ne.s32.totalorder %s71, %s72
    %p81 = scmp.eq.s32.totalorder %s19, 0
    %p82 = por %p80, %p81
    %p83 = scmp.ne.s32.totalorder %s71, %s72
    %p84 = scmp.eq.s32.totalorder %s20, 1
    %p85 = por %p83, %p84
    %p87 = scmp.ne.s32.totalorder %s72, %s86
    %p88 = scmp.eq.s32.totalorder %s20, 0
    %p89 = por %p87, %p88
    %s91 = sadd.s32 %s90, 1
    %p94 = scmp.eq.s32.totalorder %s14, 1
    %p95 = scmp.ne.s32.totalorder %s90, %s92
    %p96 = scmp.eq.s32.totalorder %s14, 0
    %p97 = por %p95, %p96
    %p98 = scmp.ne.s32.totalorder %s90, %s92
    %p99 = scmp.eq.s32.totalorder %s19, 1
    %p100 = por %p98, %p99
    %p101 = scmp.ne.s32.totalorder %s92, %s93
    %p102 = scmp.eq.s32.totalorder %s19, 0
    %p103 = por %p101, %p102
    %p104 = scmp.ne.s32.totalorder %s92, %s93
    %p105 = scmp.eq.s32.totalorder %s20, 1
    %p106 = por %p104, %p105
    %p108 = scmp.ne.s32.totalorder %s93, %s107
    %p109 = scmp.eq.s32.totalorder %s20, 0
    %p110 = por %p108, %p109
    %s112 = sadd.s32 %s111, 1
    %p115 = scmp.eq.s32.totalorder %s14, 1
    %p116 = scmp.ne.s32.totalorder %s111, %s113
    %p117 = scmp.eq.s32.totalorder %s14, 0
    %p118 = por %p116, %p117
    %p119 = scmp.ne.s32.totalorder %s111, %s113
    %p120 = scmp.eq.s32.totalorder %s19, 1
    %p121 = por %p119, %p120
    %p122 = scmp.ne.s32.totalorder %s113, %s114
    %p123 = scmp.eq.s32.totalorder %s19, 0
    %p124 = por %p122, %p123
    %p125 = scmp.ne.s32.totalorder %s113, %s114
    %p126 = scmp.eq.s32.totalorder %s20, 1
    %p127 = por %p125, %p126
    %p129 = scmp.ne.s32.totalorder %s114, %s128
    %p130 = scmp.eq.s32.totalorder %s20, 0
    %p131 = por %p129, %p130
    %s133 = sadd.s32 %s132, 1
    %p136 = scmp.eq.s32.totalorder %s14, 1
    %p137 = scmp.ne.s32.totalorder %s132, %s134
    %p138 = scmp.eq.s32.totalorder %s14, 0
    %p139 = por %p137, %p138
    %p140 = scmp.ne.s32.totalorder %s132, %s134
    %p141 = scmp.eq.s32.totalorder %s19, 1
    %p142 = por %p140, %p141
    %p143 = scmp.ne.s32.totalorder %s134, %s135
    %p144 = scmp.eq.s32.totalorder %s19, 0
    %p145 = por %p143, %p144
    %p146 = scmp.ne.s32.totalorder %s134, %s135
    %p147 = scmp.eq.s32.totalorder %s20, 1
    %p148 = por %p146, %p147
    %p150 = scmp.ne.s32.totalorder %s135, %s149
    %p151 = scmp.eq.s32.totalorder %s20, 0
    %p152 = por %p150, %p151
    %s154 = sadd.s32 %s153, 1
    %p157 = scmp.eq.s32.totalorder %s14, 1
    %p158 = scmp.ne.s32.totalorder %s153, %s155
    %p159 = scmp.eq.s32.totalorder %s14, 0
    %p160 = por %p158, %p159
    %p161 = scmp.ne.s32.totalorder %s153, %s155
    %p162 = scmp.eq.s32.totalorder %s19, 1
    %p163 = por %p161, %p162
    %p164 = scmp.ne.s32.totalorder %s155, %s156
    %p165 = scmp.eq.s32.totalorder %s19, 0
    %p166 = por %p164, %p165
    %p167 = scmp.ne.s32.totalorder %s155, %s156
    %p168 = scmp.eq.s32.totalorder %s20, 1
    %p169 = por %p167, %p168
    %p171 = scmp.ne.s32.totalorder %s156, %s170
    %p172 = scmp.eq.s32.totalorder %s20, 0
    %p173 = por %p171, %p172
    %s175 = sadd.s32 %s174, 1
    %p178 = scmp.eq.s32.totalorder %s14, 1
    %p179 = scmp.ne.s32.totalorder %s174, %s176
    %p180 = scmp.eq.s32.totalorder %s14, 0
    %p181 = por %p179, %p180
    %p182 = scmp.ne.s32.totalorder %s174, %s176
    %p183 = scmp.eq.s32.totalorder %s19, 1
    %p184 = por %p182, %p183
    %p185 = scmp.ne.s32.totalorder %s176, %s177
    %p186 = scmp.eq.s32.totalorder %s19, 0
    %p187 = por %p185, %p186
    %p188 = scmp.ne.s32.totalorder %s176, %s177
    %p189 = scmp.eq.s32.totalorder %s20, 1
    %p190 = por %p188, %p189
    %p192 = scmp.ne.s32.totalorder %s177, %s191
    %p193 = scmp.eq.s32.totalorder %s20, 0
    %p194 = por %p192, %p193
    %s195 = ssub.s32 %s14, %s21
    %p196 = scmp.eq.s32.totalorder %s195, 0
    %s198 = sadd.s32 %s197, 1
    %s199 = scalar_select %p196, %s197, %s198
    %p202 = pneg %p196
    %p203 = scmp.eq.s32.totalorder %s14, 1
    %p204 = por %p202, %p203
    %p205 = scmp.ne.s32.totalorder %s197, %s200
    %p206 = scmp.eq.s32.totalorder %s14, 0
    %p207 = por %p205, %p206
    %p208 = scmp.ne.s32.totalorder %s197, %s200
    %p209 = scmp.eq.s32.totalorder %s19, 1
    %p210 = por %p208, %p209
    %p211 = scmp.ne.s32.totalorder %s200, %s201
    %p212 = scmp.eq.s32.totalorder %s19, 0
    %p213 = por %p211, %p212
    %p214 = scmp.ne.s32.totalorder %s200, %s201
    %p215 = scmp.eq.s32.totalorder %s20, 1
    %p216 = por %p214, %p215
    %p218 = scmp.ne.s32.totalorder %s201, %s217
    %p219 = scmp.eq.s32.totalorder %s20, 0
    %p220 = por %p218, %p219
    %p221 = scmp.le.s32.totalorder 1, %s14
    %p222 = scmp.lt.s32.totalorder %s14, 3
    %p223 = pnand %p221, %p222
    %p224 = pneg %p223
    // Predicated region
    $region9: #{context_module_forward.1} parent=5 // pred_check
      _
    $region10: #{context_module_forward.1} parent=5 // pred_check_branch
      %226 = sbr.rel (%p223) target = $region12
    $region11: #{context_module_forward.1} parent=5 // pred_region
      %s227 = ssub.s32 %s14, 1
      // Predicated region
      $region13: #{context_module_forward.1} parent=11 // pred_check
        %p228 = pneg %p61
      $region14: #{context_module_forward.1} parent=11 // pred_check_branch
        %230 = sbr.rel (%p228) target = $region16
      $region15: #{context_module_forward.1} parent=11 // pred_region
        _
      $region16: #{context_module_forward.1} parent=11 // pred_fallthru
        _
      // Predicated region
      $region17: #{context_module_forward.1} parent=11 // pred_check
        %p231 = pneg %p82
      $region18: #{context_module_forward.1} parent=11 // pred_check_branch
        %233 = sbr.rel (%p231) target = $region20
      $region19: #{context_module_forward.1} parent=11 // pred_region
        _
      $region20: #{context_module_forward.1} parent=11 // pred_fallthru
        _
      // Predicated region
      $region21: #{context_module_forward.1} parent=11 // pred_check
        %p234 = pneg %p103
      $region22: #{context_module_forward.1} parent=11 // pred_check_branch
        %236 = sbr.rel (%p234) target = $region24
      $region23: #{context_module_forward.1} parent=11 // pred_region
        _
      $region24: #{context_module_forward.1} parent=11 // pred_fallthru
        _
      // Predicated region
      $region25: #{context_module_forward.1} parent=11 // pred_check
        %p237 = pneg %p124
      $region26: #{context_module_forward.1} parent=11 // pred_check_branch
        %239 = sbr.rel (%p237) target = $region28
      $region27: #{context_module_forward.1} parent=11 // pred_region
        _
      $region28: #{context_module_forward.1} parent=11 // pred_fallthru
        _
      // Predicated region
      $region29: #{context_module_forward.1} parent=11 // pred_check
        %p240 = pneg %p145
      $region30: #{context_module_forward.1} parent=11 // pred_check_branch
        %242 = sbr.rel (%p240) target = $region32
      $region31: #{context_module_forward.1} parent=11 // pred_region
        _
      $region32: #{context_module_forward.1} parent=11 // pred_fallthru
        _
      // Predicated region
      $region33: #{context_module_forward.1} parent=11 // pred_check
        %p243 = pneg %p166
      $region34: #{context_module_forward.1} parent=11 // pred_check_branch
        %245 = sbr.rel (%p243) target = $region36
      $region35: #{context_module_forward.1} parent=11 // pred_region
        _
      $region36: #{context_module_forward.1} parent=11 // pred_fallthru
        _
      // Predicated region
      $region37: #{context_module_forward.1} parent=11 // pred_check
        %p246 = pneg %p187
      $region38: #{context_module_forward.1} parent=11 // pred_check_branch
        %248 = sbr.rel (%p246) target = $region40
      $region39: #{context_module_forward.1} parent=11 // pred_region
        _
      $region40: #{context_module_forward.1} parent=11 // pred_fallthru
        _
    $region12: #{context_module_forward.1} parent=5 // pred_fallthru
      _
    %p249 = scmp.lt.s32.totalorder %s14, 2
    // Predicated region
    $region41: #{context_module_forward.1} parent=5 // pred_check
      %p250 = pneg %p249
    $region42: #{context_module_forward.1} parent=5 // pred_check_branch
      %252 = sbr.rel (%p250) target = $region44
    $region43: #{context_module_forward.1} parent=5 // pred_region
      // Predicated region
      $region45: #{context_module_forward.1} parent=43 // pred_check
        %p253 = pneg %p34
      $region46: #{context_module_forward.1} parent=43 // pred_check_branch
        %255 = sbr.rel (%p253) target = $region48
      $region47: #{context_module_forward.1} parent=43 // pred_region
        %p256 = scmp.lt.s32.totalorder %s14, 1
        %s257 = scalar_select %p256, %s14, 1
        %s258 = smul.addr %s257, 4
        %s259 = smul.addr %s258, 8
        %s260 = scalar_lea.vmem %s0, %s259
      $region48: #{context_module_forward.1} parent=43 // pred_fallthru
        _
    $region44: #{context_module_forward.1} parent=5 // pred_fallthru
      _
    %p261 = scmp.le.s32.totalorder 1, %s14
    %p262 = scmp.lt.s32.totalorder %s14, 3
    %p263 = pnand %p261, %p262
    %p264 = pneg %p263
    // Predicated region
    $region49: #{context_module_forward.1} parent=5 // pred_check
      _
    $region50: #{context_module_forward.1} parent=5 // pred_check_branch
      %266 = sbr.rel (%p263) target = $region52
    $region51: #{context_module_forward.1} parent=5 // pred_region
      %s267 = ssub.s32 %s14, 1
      %p268 = scmp.lt.s32.totalorder %s19, 1
      %s269 = scalar_select %p268, %s19, 1
      %s270 = smul.addr %s269, 4
      %s271 = smul.addr %s270, 8
      %s272 = scalar_lea.vmem %s0, %s271
      %p273 = pneg %p40
      %p274 = pneg %p37
      %p275 = pneg %p61
      %p276 = pneg %p58
      %p277 = pneg %p82
      %p278 = pneg %p79
      %p279 = pneg %p103
      %p280 = pneg %p100
      %p281 = pneg %p124
      %p282 = pneg %p121
      %p283 = pneg %p145
      %p284 = pneg %p142
      %p285 = pneg %p166
      %p286 = pneg %p163
      %p287 = pneg %p187
      %p288 = pneg %p184
      %p289 = pneg %p213
      %p290 = pneg %p210
      %p291 = scmp.lt.s32.totalorder %s19, 1
      %s292 = scalar_select %p291, %s19, 1
      %s293 = smul.addr %s292, 4
      %s294 = smul.addr %s293, 8
      %s295 = scalar_lea.vmem %s8, %s294
      %p296 = scmp.lt.s32.totalorder %s19, 1
      %s297 = scalar_select %p296, %s19, 1
      %s298 = smul.addr %s297, 4
      %s299 = smul.addr %s298, 8
      %s300 = scalar_lea.vmem %s0, %s299
      %p301 = scmp.lt.s32.totalorder %s19, 1
      %s302 = scalar_select %p301, %s19, 1
      %s303 = smul.addr %s302, 4
      %s304 = smul.addr %s303, 8
      %s305 = scalar_lea.vmem %s8, %s304
      %v307 = vld [vmem:[%s300] sm:$0xff]
      %v308 = vld [vmem:[%s300 + $0x8] sm:$0xff]
      %v309 = vld [vmem:[%s300 + $0x10] sm:$0xff]
      %v310 = vld [vmem:[%s300 + $0x18] sm:$0xff]
      %311 = vrot.lane.b32.xlu0 %v307, 17
      %v312 = vpop.permute.xlu0 %311
      %313 = vrot.lane.b32.xlu0 %v309, 17
      %v314 = vpop.permute.xlu0 %313
      %315 = vrot.lane.b32.xlu0 %v308, 17
      %v316 = vpop.permute.xlu0 %315
      %317 = vrot.lane.b32.xlu0 %v310, 17
      %v318 = vpop.permute.xlu0 %317
      %v319 = vlaneseq
      %v320 = vand.u32 %v319, 127
      %vm321 = vcmp.lt.s32.totalorder %v320, 17
      %v322 = vsel %vm321, %v312, %v316
      %v323 = vsel %vm321, %v314, %v318
      %v324 = vsel %vm321, %v316, %v312
      %v325 = vsel %vm321, %v318, %v314
      %v326 = vld [vmem:[%s1] ss:$8 sm:$0x3]
      %v328 = vlaneseq
      %v329 = vshrl.u32 %v328, 7
      %v330 = vsub.s32 0, %v329
      %v331 = vrot.slane %v326, %v330
      %v332 = vlaneseq
      %v333 = vshrl.u32 %v332, 7
      %v334 = vsub.s32 1, %v333
      %v335 = vrot.slane %v326, %v334
      %v338 = vmul.f32 %v324, %v331
      %v339 = vmul.f32 %v322, %v335
      %v340 = vmul.f32 %v325, %v331
      %v341 = vmul.f32 %v323, %v335
      %v342 = vpack.c.bf16 %v340, %v338
      %v343 = vpack.c.bf16 %v341, %v339
      %344 = vrot.lane.b32.xlu0 %v307, 16
      %v345 = vpop.permute.xlu0 %344
      %346 = vrot.lane.b32.xlu0 %v309, 16
      %v347 = vpop.permute.xlu0 %346
      %348 = vrot.lane.b32.xlu0 %v308, 16
      %v349 = vpop.permute.xlu0 %348
      %350 = vrot.lane.b32.xlu0 %v310, 16
      %v351 = vpop.permute.xlu0 %350
      %vm352 = vcmp.lt.s32.totalorder %v320, 16
      %v353 = vsel %vm352, %v345, %v349
      %v354 = vsel %vm352, %v347, %v351
      %v355 = vsel %vm352, %v349, %v345
      %v356 = vsel %vm352, %v351, %v347
      %s357 = scalar_lea.vmem %s1, 1
      %v358 = vld [vmem:[%s357] ss:$8 sm:$0x3]
      %v360 = vlaneseq
      %v361 = vshrl.u32 %v360, 7
      %v362 = vsub.s32 0, %v361
      %v363 = vrot.slane %v358, %v362
      %v364 = vlaneseq
      %v365 = vshrl.u32 %v364, 7
      %v366 = vsub.s32 1, %v365
      %v367 = vrot.slane %v358, %v366
      %v370 = vmul.f32 %v355, %v363
      %v371 = vmul.f32 %v353, %v367
      %v372 = vmul.f32 %v356, %v363
      %v373 = vmul.f32 %v354, %v367
      %v374 = vpack.c.bf16 %v372, %v370
      %v375 = vpack.c.bf16 %v373, %v371
      %376 = vrot.lane.b32.xlu0 %v307, 15
      %v377 = vpop.permute.xlu0 %376
      %378 = vrot.lane.b32.xlu0 %v309, 15
      %v379 = vpop.permute.xlu0 %378
      %380 = vrot.lane.b32.xlu0 %v308, 15
      %v381 = vpop.permute.xlu0 %380
      %382 = vrot.lane.b32.xlu0 %v310, 15
      %v383 = vpop.permute.xlu0 %382
      %vm384 = vcmp.lt.s32.totalorder %v320, 15
      %v385 = vsel %vm384, %v377, %v381
      %v386 = vsel %vm384, %v379, %v383
      %v387 = vsel %vm384, %v381, %v377
      %v388 = vsel %vm384, %v383, %v379
      %s389 = scalar_lea.vmem %s1, 2
      %v390 = vld [vmem:[%s389] ss:$8 sm:$0x3]
      %v392 = vlaneseq
      %v393 = vshrl.u32 %v392, 7
      %v394 = vsub.s32 0, %v393
      %v395 = vrot.slane %v390, %v394
      %v396 = vlaneseq
      %v397 = vshrl.u32 %v396, 7
      %v398 = vsub.s32 1, %v397
      %v399 = vrot.slane %v390, %v398
      %v402 = vmul.f32 %v387, %v395
      %v403 = vmul.f32 %v385, %v399
      %v404 = vmul.f32 %v388, %v395
      %v405 = vmul.f32 %v386, %v399
      %v406 = vpack.c.bf16 %v404, %v402
      %v407 = vpack.c.bf16 %v405, %v403
      %408 = vrot.lane.b32.xlu0 %v307, 1
      %v409 = vpop.permute.xlu0 %408
      %410 = vrot.lane.b32.xlu0 %v309, 1
      %v411 = vpop.permute.xlu0 %410
      %412 = vrot.lane.b32.xlu0 %v308, 1
      %v413 = vpop.permute.xlu0 %412
      %414 = vrot.lane.b32.xlu0 %v310, 1
      %v415 = vpop.permute.xlu0 %414
      %vm416 = vcmp.lt.s32.totalorder %v320, 1
      %v417 = vsel %vm416, %v409, %v413
      %v418 = vsel %vm416, %v411, %v415
      %v419 = vsel %vm416, %v413, %v409
      %v420 = vsel %vm416, %v415, %v411
      %s421 = scalar_lea.vmem %s1, 3
      %v422 = vld [vmem:[%s421] ss:$8 sm:$0x3]
      %v424 = vlaneseq
      %v425 = vshrl.u32 %v424, 7
      %v426 = vsub.s32 0, %v425
      %v427 = vrot.slane %v422, %v426
      %v428 = vlaneseq
      %v429 = vshrl.u32 %v428, 7
      %v430 = vsub.s32 1, %v429
      %v431 = vrot.slane %v422, %v430
      %v434 = vmul.f32 %v419, %v427
      %v435 = vmul.f32 %v417, %v431
      %v436 = vmul.f32 %v420, %v427
      %v437 = vmul.f32 %v418, %v431
      %v438 = vpack.c.bf16 %v436, %v434
      %v439 = vpack.c.bf16 %v437, %v435
      %v440 = vpack.c.bf16 %v309, %v307
      %v441 = vpack.c.bf16 %v310, %v308
      %442 = vrot.lane.b32.xlu0 %v307, 127
      %v443 = vpop.permute.xlu0 %442
      %444 = vrot.lane.b32.xlu0 %v309, 127
      %v445 = vpop.permute.xlu0 %444
      %446 = vrot.lane.b32.xlu0 %v308, 127
      %v447 = vpop.permute.xlu0 %446
      %448 = vrot.lane.b32.xlu0 %v310, 127
      %v449 = vpop.permute.xlu0 %448
      %vm450 = vcmp.lt.s32.totalorder %v320, 127
      %v451 = vsel %vm450, %v443, %v447
      %v452 = vsel %vm450, %v445, %v449
      %v453 = vsel %vm450, %v447, %v443
      %v454 = vsel %vm450, %v449, %v445
      %s455 = scalar_lea.vmem %s1, 5
      %v456 = vld [vmem:[%s455] ss:$8 sm:$0x3]
      %v458 = vlaneseq
      %v459 = vshrl.u32 %v458, 7
      %v460 = vsub.s32 0, %v459
      %v461 = vrot.slane %v456, %v460
      %v462 = vlaneseq
      %v463 = vshrl.u32 %v462, 7
      %v464 = vsub.s32 1, %v463
      %v465 = vrot.slane %v456, %v464
      %v468 = vmul.f32 %v451, %v461
      %v469 = vmul.f32 %v453, %v465
      %v470 = vmul.f32 %v452, %v461
      %v471 = vmul.f32 %v454, %v465
      %v472 = vpack.c.bf16 %v470, %v468
      %v473 = vpack.c.bf16 %v471, %v469
      %474 = vrot.lane.b32.xlu0 %v307, 113
      %v475 = vpop.permute.xlu0 %474
      %476 = vrot.lane.b32.xlu0 %v309, 113
      %v477 = vpop.permute.xlu0 %476
      %478 = vrot.lane.b32.xlu0 %v308, 113
      %v479 = vpop.permute.xlu0 %478
      %480 = vrot.lane.b32.xlu0 %v310, 113
      %v481 = vpop.permute.xlu0 %480
      %vm482 = vcmp.lt.s32.totalorder %v320, 113
      %v483 = vsel %vm482, %v475, %v479
      %v484 = vsel %vm482, %v477, %v481
      %v485 = vsel %vm482, %v479, %v475
      %v486 = vsel %vm482, %v481, %v477
      %s487 = scalar_lea.vmem %s1, 6
      %v488 = vld [vmem:[%s487] ss:$8 sm:$0x3]
      %v490 = vlaneseq
      %v491 = vshrl.u32 %v490, 7
      %v492 = vsub.s32 0, %v491
      %v493 = vrot.slane %v488, %v492
      %v494 = vlaneseq
      %v495 = vshrl.u32 %v494, 7
      %v496 = vsub.s32 1, %v495
      %v497 = vrot.slane %v488, %v496
      %v500 = vmul.f32 %v483, %v493
      %v501 = vmul.f32 %v485, %v497
      %v502 = vmul.f32 %v484, %v493
      %v503 = vmul.f32 %v486, %v497
      %v504 = vpack.c.bf16 %v502, %v500
      %v505 = vpack.c.bf16 %v503, %v501
      %506 = vrot.lane.b32.xlu0 %v307, 112
      %v507 = vpop.permute.xlu0 %506
      %508 = vrot.lane.b32.xlu0 %v309, 112
      %v509 = vpop.permute.xlu0 %508
      %510 = vrot.lane.b32.xlu0 %v308, 112
      %v511 = vpop.permute.xlu0 %510
      %512 = vrot.lane.b32.xlu0 %v310, 112
      %v513 = vpop.permute.xlu0 %512
      %vm514 = vcmp.lt.s32.totalorder %v320, 112
      %v515 = vsel %vm514, %v507, %v511
      %v516 = vsel %vm514, %v509, %v513
      %v517 = vsel %vm514, %v511, %v507
      %v518 = vsel %vm514, %v513, %v509
      %s519 = scalar_lea.vmem %s1, 7
      %v520 = vld [vmem:[%s519] ss:$8 sm:$0x3]
      %v522 = vlaneseq
      %v523 = vshrl.u32 %v522, 7
      %v524 = vsub.s32 0, %v523
      %v525 = vrot.slane %v520, %v524
      %v526 = vlaneseq
      %v527 = vshrl.u32 %v526, 7
      %v528 = vsub.s32 1, %v527
      %v529 = vrot.slane %v520, %v528
      %v532 = vmul.f32 %v515, %v525
      %v533 = vmul.f32 %v517, %v529
      %v534 = vmul.f32 %v516, %v525
      %v535 = vmul.f32 %v518, %v529
      %v536 = vpack.c.bf16 %v534, %v532
      %v537 = vpack.c.bf16 %v535, %v533
      %538 = vrot.lane.b32.xlu0 %v307, 111
      %v539 = vpop.permute.xlu0 %538
      %540 = vrot.lane.b32.xlu0 %v309, 111
      %v541 = vpop.permute.xlu0 %540
      %542 = vrot.lane.b32.xlu0 %v308, 111
      %v543 = vpop.permute.xlu0 %542
      %544 = vrot.lane.b32.xlu0 %v310, 111
      %v545 = vpop.permute.xlu0 %544
      %vm546 = vcmp.lt.s32.totalorder %v320, 111
      %v547 = vsel %vm546, %v539, %v543
      %v548 = vsel %vm546, %v541, %v545
      %v549 = vsel %vm546, %v543, %v539
      %v550 = vsel %vm546, %v545, %v541
      %s551 = scalar_lea.vmem %s1, 16
      %v552 = vld [vmem:[%s551] ss:$8 sm:$0x3]
      %v554 = vlaneseq
      %v555 = vshrl.u32 %v554, 7
      %v556 = vsub.s32 0, %v555
      %v557 = vrot.slane %v552, %v556
      %v558 = vlaneseq
      %v559 = vshrl.u32 %v558, 7
      %v560 = vsub.s32 1, %v559
      %v561 = vrot.slane %v552, %v560
      %v564 = vmul.f32 %v547, %v557
      %v565 = vmul.f32 %v549, %v561
      %v566 = vmul.f32 %v548, %v557
      %v567 = vmul.f32 %v550, %v561
      %v568 = vpack.c.bf16 %v566, %v564
      %v569 = vpack.c.bf16 %v567, %v565
      %v570 = vld [vmem:[%s2] sm:$0xff]
      %v571 = vld [vmem:[%s2 + $0x8] sm:$0xff]
      %v572 = vld [vmem:[%s5] sm:$0xff]
      %v573 = vld [vmem:[%s5 + $0x8] sm:$0xff]
      %575 = vset.pattern.permute.xlu0 0
      %576 = vperm.xlu0 %575, %v572
      %v577 = vpop.permute.xlu0 %576
      %580 = vset.pattern.permute.xlu0 0
      %581 = vperm.xlu0 %580, %v573
      %v582 = vpop.permute.xlu0 %581
      %v586 = vunpack.c.l.b16 %v570
      %v587 = vunpack.c.h.b16 %v570
      %v588 = vunpack.c.l.b16 %v571
      %v589 = vunpack.c.h.b16 %v571
      %v590 = vpack.c.b16 %v588, %v586
      %v591 = vpack.c.b16 %v589, %v587
      %vm593 = vcmask 130048
      %v595 = vsel %vm593, %v591, 0
      %597 = vmatprep.subr.bf16.mxu0 %v343
      %598 = vmatpush1.bf16.msra.mxu0 %v342
      %599 = vmatprep.subr.bf16.mxu0 %v375
      %600 = vmatpush1.bf16.msra.mxu0 %v374
      %601 = vmatprep.subr.bf16.mxu0 %v407
      %602 = vmatpush1.bf16.msra.mxu0 %v406
      %603 = vmatprep.subr.bf16.mxu0 %v439
      %604 = vmatpush1.bf16.msra.mxu0 %v438
      %605 = vmatprep.subr.bf16.mxu0 %v441
      %606 = vmatpush1.bf16.msra.mxu0 %v440
      %607 = vmatprep.subr.bf16.mxu0 %v473
      %608 = vmatpush1.bf16.msra.mxu0 %v472
      %609 = vmatprep.subr.bf16.mxu0 %v505
      %610 = vmatpush1.bf16.msra.mxu0 %v504
      %611 = vmatprep.subr.bf16.mxu0 %v537
      %612 = vmatpush1.bf16.msra.mxu0 %v536
      %613 = vmatprep.subr.bf16.mxu0 %v569
      %614 = vmatpush1.bf16.msra.mxu0 %v568
      %615 = vmatprep.subr.bf16.mxu0 0
      %616 = vmatpush1.bf16.msra.mxu0 0
      %617 = vmatprep.subr.bf16.mxu0 0
      %618 = vmatpush1.bf16.msra.mxu0 0
      %619 = vmatprep.subr.bf16.mxu0 0
      %620 = vmatpush1.bf16.msra.mxu0 0
      %621 = vmatprep.subr.bf16.mxu0 0
      %622 = vmatpush1.bf16.msra.mxu0 0
      %623 = vmatprep.subr.bf16.mxu0 0
      %624 = vmatpush1.bf16.msra.mxu0 0
      %625 = vmatprep.subr.bf16.mxu0 0
      %626 = vmatpush1.bf16.msra.mxu0 0
      %627 = vmatprep.subr.bf16.mxu0 0
      %628 = vmatpush1.bf16.msra.mxu0 0
      %629 = vmatprep.mubr.bf16.mxu0 %v595
      %630 = vmatmul.mubr.bf16.gmra.mrb[0].mxu0 %v590
      %v631 = vpop.f32.mrb[0].mxu0
      %v632 = vadd.f32 %v577, %v631
      %v633 = vpop.f32.mrb[0].mxu0
      %v634 = vadd.f32 %v577, %v633
      %v635 = vpop.f32.mrb[0].mxu0
      %v636 = vadd.f32 %v582, %v635
      %v637 = vpop.f32.mrb[0].mxu0
      %v638 = vadd.f32 %v582, %v637
      %639 = vdwg.mxu0
      %v640 = vmax.f32 %v632, 0.0
      %v641 = vmax.f32 %v634, 0.0
      %v642 = vmax.f32 %v636, 0.0
      %v643 = vmax.f32 %v638, 0.0
      %644 = vrot.lane.b32.xlu0 %v640, 17
      %v645 = vpop.permute.xlu0 %644
      %646 = vrot.lane.b32.xlu0 %v642, 17
      %v647 = vpop.permute.xlu0 %646
      %648 = vrot.lane.b32.xlu0 %v641, 17
      %v649 = vpop.permute.xlu0 %648
      %650 = vrot.lane.b32.xlu0 %v643, 17
      %v651 = vpop.permute.xlu0 %650
      %v652 = vsel %vm321, %v645, %v649
      %v653 = vsel %vm321, %v647, %v651
      %v654 = vsel %vm321, %v649, %v645
      %v655 = vsel %vm321, %v651, %v647
      %v656 = vmul.f32 %v654, %v331
      %v657 = vmul.f32 %v652, %v335
      %v658 = vmul.f32 %v655, %v331
      %v659 = vmul.f32 %v653, %v335
      %v660 = vpack.c.bf16 %v658, %v656
      %v661 = vpack.c.bf16 %v659, %v657
      %662 = vrot.lane.b32.xlu0 %v640, 16
      %v663 = vpop.permute.xlu0 %662
      %664 = vrot.lane.b32.xlu0 %v642, 16
      %v665 = vpop.permute.xlu0 %664
      %666 = vrot.lane.b32.xlu0 %v641, 16
      %v667 = vpop.permute.xlu0 %666
      %668 = vrot.lane.b32.xlu0 %v643, 16
      %v669 = vpop.permute.xlu0 %668
      %v670 = vsel %vm352, %v663, %v667
      %v671 = vsel %vm352, %v665, %v669
      %v672 = vsel %vm352, %v667, %v663
      %v673 = vsel %vm352, %v669, %v665
      %v674 = vmul.f32 %v672, %v363
      %v675 = vmul.f32 %v670, %v367
      %v676 = vmul.f32 %v673, %v363
      %v677 = vmul.f32 %v671, %v367
      %v678 = vpack.c.bf16 %v676, %v674
      %v679 = vpack.c.bf16 %v677, %v675
      %680 = vrot.lane.b32.xlu0 %v640, 15
      %v681 = vpop.permute.xlu0 %680
      %682 = vrot.lane.b32.xlu0 %v642, 15
      %v683 = vpop.permute.xlu0 %682
      %684 = vrot.lane.b32.xlu0 %v641, 15
      %v685 = vpop.permute.xlu0 %684
      %686 = vrot.lane.b32.xlu0 %v643, 15
      %v687 = vpop.permute.xlu0 %686
      %v688 = vsel %vm384, %v681, %v685
      %v689 = vsel %vm384, %v683, %v687
      %v690 = vsel %vm384, %v685, %v681
      %v691 = vsel %vm384, %v687, %v683
      %v692 = vmul.f32 %v690, %v395
      %v693 = vmul.f32 %v688, %v399
      %v694 = vmul.f32 %v691, %v395
      %v695 = vmul.f32 %v689, %v399
      %v696 = vpack.c.bf16 %v694, %v692
      %v697 = vpack.c.bf16 %v695, %v693
      %698 = vrot.lane.b32.xlu0 %v640, 1
      %v699 = vpop.permute.xlu0 %698
      %700 = vrot.lane.b32.xlu0 %v642, 1
      %v701 = vpop.permute.xlu0 %700
      %702 = vrot.lane.b32.xlu0 %v641, 1
      %v703 = vpop.permute.xlu0 %702
      %704 = vrot.lane.b32.xlu0 %v643, 1
      %v705 = vpop.permute.xlu0 %704
      %v706 = vsel %vm416, %v699, %v703
      %v707 = vsel %vm416, %v701, %v705
      %v708 = vsel %vm416, %v703, %v699
      %v709 = vsel %vm416, %v705, %v701
      %v710 = vmul.f32 %v708, %v427
      %v711 = vmul.f32 %v706, %v431
      %v712 = vmul.f32 %v709, %v427
      %v713 = vmul.f32 %v707, %v431
      %v714 = vpack.c.bf16 %v712, %v710
      %v715 = vpack.c.bf16 %v713, %v711
      %v716 = vpack.c.bf16 %v642, %v640
      %v717 = vpack.c.bf16 %v643, %v641
      %718 = vrot.lane.b32.xlu0 %v640, 127
      %v719 = vpop.permute.xlu0 %718
      %720 = vrot.lane.b32.xlu0 %v642, 127
      %v721 = vpop.permute.xlu0 %720
      %722 = vrot.lane.b32.xlu0 %v641, 127
      %v723 = vpop.permute.xlu0 %722
      %724 = vrot.lane.b32.xlu0 %v643, 127
      %v725 = vpop.permute.xlu0 %724
      %v726 = vsel %vm450, %v719, %v723
      %v727 = vsel %vm450, %v721, %v725
      %v728 = vsel %vm450, %v723, %v719
      %v729 = vsel %vm450, %v725, %v721
      %v730 = vmul.f32 %v726, %v461
      %v731 = vmul.f32 %v728, %v465
      %v732 = vmul.f32 %v727, %v461
      %v733 = vmul.f32 %v729, %v465
      %v734 = vpack.c.bf16 %v732, %v730
      %v735 = vpack.c.bf16 %v733, %v731
      %736 = vrot.lane.b32.xlu0 %v640, 113
      %v737 = vpop.permute.xlu0 %736
      %738 = vrot.lane.b32.xlu0 %v642, 113
      %v739 = vpop.permute.xlu0 %738
      %740 = vrot.lane.b32.xlu0 %v641, 113
      %v741 = vpop.permute.xlu0 %740
      %742 = vrot.lane.b32.xlu0 %v643, 113
      %v743 = vpop.permute.xlu0 %742
      %v744 = vsel %vm482, %v737, %v741
      %v745 = vsel %vm482, %v739, %v743
      %v746 = vsel %vm482, %v741, %v737
      %v747 = vsel %vm482, %v743, %v739
      %v748 = vmul.f32 %v744, %v493
      %v749 = vmul.f32 %v746, %v497
      %v750 = vmul.f32 %v745, %v493
      %v751 = vmul.f32 %v747, %v497
      %v752 = vpack.c.bf16 %v750, %v748
      %v753 = vpack.c.bf16 %v751, %v749
      %754 = vrot.lane.b32.xlu0 %v640, 112
      %v755 = vpop.permute.xlu0 %754
      %756 = vrot.lane.b32.xlu0 %v642, 112
      %v757 = vpop.permute.xlu0 %756
      %758 = vrot.lane.b32.xlu0 %v641, 112
      %v759 = vpop.permute.xlu0 %758
      %760 = vrot.lane.b32.xlu0 %v643, 112
      %v761 = vpop.permute.xlu0 %760
      %v762 = vsel %vm514, %v755, %v759
      %v763 = vsel %vm514, %v757, %v761
      %v764 = vsel %vm514, %v759, %v755
      %v765 = vsel %vm514, %v761, %v757
      %v766 = vmul.f32 %v762, %v525
      %v767 = vmul.f32 %v764, %v529
      %v768 = vmul.f32 %v763, %v525
      %v769 = vmul.f32 %v765, %v529
      %v770 = vpack.c.bf16 %v768, %v766
      %v771 = vpack.c.bf16 %v769, %v767
      %772 = vrot.lane.b32.xlu0 %v640, 111
      %v773 = vpop.permute.xlu0 %772
      %774 = vrot.lane.b32.xlu0 %v642, 111
      %v775 = vpop.permute.xlu0 %774
      %776 = vrot.lane.b32.xlu0 %v641, 111
      %v777 = vpop.permute.xlu0 %776
      %778 = vrot.lane.b32.xlu0 %v643, 111
      %v779 = vpop.permute.xlu0 %778
      %v780 = vsel %vm546, %v773, %v777
      %v781 = vsel %vm546, %v775, %v779
      %v782 = vsel %vm546, %v777, %v773
      %v783 = vsel %vm546, %v779, %v775
      %v784 = vmul.f32 %v780, %v557
      %v785 = vmul.f32 %v782, %v561
      %v786 = vmul.f32 %v781, %v557
      %v787 = vmul.f32 %v783, %v561
      %v788 = vpack.c.bf16 %v786, %v784
      %v789 = vpack.c.bf16 %v787, %v785
      %v790 = vld [vmem:[%s3] sm:$0xff]
      %v791 = vld [vmem:[%s3 + $0x8] sm:$0xff]
      %v792 = vld [vmem:[%s3 + $0x10] sm:$0xff]
      %v793 = vld [vmem:[%s3 + $0x18] sm:$0xff]
      %v794 = vld [vmem:[%s6] sm:$0xff]
      %v795 = vld [vmem:[%s6 + $0x8] sm:$0xff]
      %v796 = vld [vmem:[%s6 + $0x10] sm:$0xff]
      %v797 = vld [vmem:[%s6 + $0x18] sm:$0xff]
      %799 = vset.pattern.permute.xlu0 0
      %800 = vperm.xlu0 %799, %v794
      %v801 = vpop.permute.xlu0 %800
      %804 = vset.pattern.permute.xlu0 0
      %805 = vperm.xlu0 %804, %v795
      %v806 = vpop.permute.xlu0 %805
      %809 = vset.pattern.permute.xlu0 0
      %810 = vperm.xlu0 %809, %v796
      %v811 = vpop.permute.xlu0 %810
      %814 = vset.pattern.permute.xlu0 0
      %815 = vperm.xlu0 %814, %v797
      %v816 = vpop.permute.xlu0 %815
      %v822 = vunpack.c.l.b16 %v790
      %v823 = vunpack.c.h.b16 %v790
      %v824 = vunpack.c.l.b16 %v791
      %v825 = vunpack.c.h.b16 %v791
      %v826 = vunpack.c.l.b16 %v792
      %v827 = vunpack.c.h.b16 %v792
      %v828 = vunpack.c.l.b16 %v793
      %v829 = vunpack.c.h.b16 %v793
      %v830 = vpack.c.b16 %v824, %v822
      %v831 = vpack.c.b16 %v825, %v823
      %v832 = vpack.c.b16 %v828, %v826
      %v833 = vpack.c.b16 %v829, %v827
      %v837 = vsel %vm593, %v831, 0
      %v840 = vsel %vm593, %v833, 0
      %842 = vmatprep.subr.bf16.mxu0 %v661
      %843 = vmatpush1.bf16.msra.mxu0 %v660
      %844 = vmatprep.subr.bf16.mxu0 %v679
      %845 = vmatpush1.bf16.msra.mxu0 %v678
      %846 = vmatprep.subr.bf16.mxu0 %v697
      %847 = vmatpush1.bf16.msra.mxu0 %v696
      %848 = vmatprep.subr.bf16.mxu0 %v715
      %849 = vmatpush1.bf16.msra.mxu0 %v714
      %850 = vmatprep.subr.bf16.mxu0 %v717
      %851 = vmatpush1.bf16.msra.mxu0 %v716
      %852 = vmatprep.subr.bf16.mxu0 %v735
      %853 = vmatpush1.bf16.msra.mxu0 %v734
      %854 = vmatprep.subr.bf16.mxu0 %v753
      %855 = vmatpush1.bf16.msra.mxu0 %v752
      %856 = vmatprep.subr.bf16.mxu0 %v771
      %857 = vmatpush1.bf16.msra.mxu0 %v770
      %858 = vmatprep.subr.bf16.mxu0 %v789
      %859 = vmatpush1.bf16.msra.mxu0 %v788
      %860 = vmatprep.subr.bf16.mxu0 0
      %861 = vmatpush1.bf16.msra.mxu0 0
      %862 = vmatprep.subr.bf16.mxu0 0
      %863 = vmatpush1.bf16.msra.mxu0 0
      %864 = vmatprep.subr.bf16.mxu0 0
      %865 = vmatpush1.bf16.msra.mxu0 0
      %866 = vmatprep.subr.bf16.mxu0 0
      %867 = vmatpush1.bf16.msra.mxu0 0
      %868 = vmatprep.subr.bf16.mxu0 0
      %869 = vmatpush1.bf16.msra.mxu0 0
      %870 = vmatprep.subr.bf16.mxu0 0
      %871 = vmatpush1.bf16.msra.mxu0 0
      %872 = vmatprep.subr.bf16.mxu0 0
      %873 = vmatpush1.bf16.msra.mxu0 0
      %874 = vmatprep.mubr.bf16.mxu0 %v837
      %875 = vmatmul.mubr.bf16.gmra.mrb[0].mxu0 %v830
      %v876 = vpop.f32.mrb[0].mxu0
      %v877 = vadd.f32 %v801, %v876
      %v878 = vpop.f32.mrb[0].mxu0
      %v879 = vadd.f32 %v801, %v878
      %v880 = vpop.f32.mrb[0].mxu0
      %v881 = vadd.f32 %v806, %v880
      %v882 = vpop.f32.mrb[0].mxu0
      %v883 = vadd.f32 %v806, %v882
      %884 = vmatprep.mubr.bf16.mxu0 %v840
      %885 = vmatmul.mubr.bf16.gmra.mrb[0].mxu0 %v832
      %v886 = vpop.f32.mrb[0].mxu0
      %v887 = vadd.f32 %v811, %v886
      %v888 = vpop.f32.mrb[0].mxu0
      %v889 = vadd.f32 %v811, %v888
      %v890 = vpop.f32.mrb[0].mxu0
      %v891 = vadd.f32 %v816, %v890
      %v892 = vpop.f32.mrb[0].mxu0
      %v893 = vadd.f32 %v816, %v892
      %894 = vdwg.mxu0
      %v895 = vmax.f32 %v877, 0.0
      %v896 = vmax.f32 %v879, 0.0
      %v897 = vmax.f32 %v881, 0.0
      %v898 = vmax.f32 %v883, 0.0
      %v899 = vmax.f32 %v887, 0.0
      %v900 = vmax.f32 %v889, 0.0
      %v901 = vmax.f32 %v891, 0.0
      %v902 = vmax.f32 %v893, 0.0
      %903 = vrot.lane.b32.xlu0 %v899, 17
      %v904 = vpop.permute.xlu0 %903
      %905 = vrot.lane.b32.xlu0 %v901, 17
      %v906 = vpop.permute.xlu0 %905
      %907 = vrot.lane.b32.xlu0 %v900, 17
      %v908 = vpop.permute.xlu0 %907
      %909 = vrot.lane.b32.xlu0 %v902, 17
      %v910 = vpop.permute.xlu0 %909
      %v911 = vsel %vm321, %v904, %v908
      %v912 = vsel %vm321, %v906, %v910
      %v913 = vsel %vm321, %v908, %v904
      %v914 = vsel %vm321, %v910, %v906
      %v915 = vmul.f32 %v913, %v331
      %v916 = vmul.f32 %v911, %v335
      %v917 = vmul.f32 %v914, %v331
      %v918 = vmul.f32 %v912, %v335
      %v919 = vpack.c.bf16 %v917, %v915
      %v920 = vpack.c.bf16 %v918, %v916
      %921 = vrot.lane.b32.xlu0 %v899, 16
      %v922 = vpop.permute.xlu0 %921
      %923 = vrot.lane.b32.xlu0 %v901, 16
      %v924 = vpop.permute.xlu0 %923
      %925 = vrot.lane.b32.xlu0 %v900, 16
      %v926 = vpop.permute.xlu0 %925
      %927 = vrot.lane.b32.xlu0 %v902, 16
      %v928 = vpop.permute.xlu0 %927
      %v929 = vsel %vm352, %v922, %v926
      %v930 = vsel %vm352, %v924, %v928
      %v931 = vsel %vm352, %v926, %v922
      %v932 = vsel %vm352, %v928, %v924
      %v933 = vmul.f32 %v931, %v363
      %v934 = vmul.f32 %v929, %v367
      %v935 = vmul.f32 %v932, %v363
      %v936 = vmul.f32 %v930, %v367
      %v937 = vpack.c.bf16 %v935, %v933
      %v938 = vpack.c.bf16 %v936, %v934
      %939 = vrot.lane.b32.xlu0 %v899, 15
      %v940 = vpop.permute.xlu0 %939
      %941 = vrot.lane.b32.xlu0 %v901, 15
      %v942 = vpop.permute.xlu0 %941
      %943 = vrot.lane.b32.xlu0 %v900, 15
      %v944 = vpop.permute.xlu0 %943
      %945 = vrot.lane.b32.xlu0 %v902, 15
      %v946 = vpop.permute.xlu0 %945
      %v947 = vsel %vm384, %v940, %v944
      %v948 = vsel %vm384, %v942, %v946
      %v949 = vsel %vm384, %v944, %v940
      %v950 = vsel %vm384, %v946, %v942
      %v951 = vmul.f32 %v949, %v395
      %v952 = vmul.f32 %v947, %v399
      %v953 = vmul.f32 %v950, %v395
      %v954 = vmul.f32 %v948, %v399
      %v955 = vpack.c.bf16 %v953, %v951
      %v956 = vpack.c.bf16 %v954, %v952
      %957 = vrot.lane.b32.xlu0 %v899, 1
      %v958 = vpop.permute.xlu0 %957
      %959 = vrot.lane.b32.xlu0 %v901, 1
      %v960 = vpop.permute.xlu0 %959
      %961 = vrot.lane.b32.xlu0 %v900, 1
      %v962 = vpop.permute.xlu0 %961
      %963 = vrot.lane.b32.xlu0 %v902, 1
      %v964 = vpop.permute.xlu0 %963
      %v965 = vsel %vm416, %v958, %v962
      %v966 = vsel %vm416, %v960, %v964
      %v967 = vsel %vm416, %v962, %v958
      %v968 = vsel %vm416, %v964, %v960
      %v969 = vmul.f32 %v967, %v427
      %v970 = vmul.f32 %v965, %v431
      %v971 = vmul.f32 %v968, %v427
      %v972 = vmul.f32 %v966, %v431
      %v973 = vpack.c.bf16 %v971, %v969
      %v974 = vpack.c.bf16 %v972, %v970
      %v975 = vpack.c.bf16 %v901, %v899
      %v976 = vpack.c.bf16 %v902, %v900
      %977 = vrot.lane.b32.xlu0 %v899, 127
      %v978 = vpop.permute.xlu0 %977
      %979 = vrot.lane.b32.xlu0 %v901, 127
      %v980 = vpop.permute.xlu0 %979
      %981 = vrot.lane.b32.xlu0 %v900, 127
      %v982 = vpop.permute.xlu0 %981
      %983 = vrot.lane.b32.xlu0 %v902, 127
      %v984 = vpop.permute.xlu0 %983
      %v985 = vsel %vm450, %v978, %v982
      %v986 = vsel %vm450, %v980, %v984
      %v987 = vsel %vm450, %v982, %v978
      %v988 = vsel %vm450, %v984, %v980
      %v989 = vmul.f32 %v985, %v461
      %v990 = vmul.f32 %v987, %v465
      %v991 = vmul.f32 %v986, %v461
      %v992 = vmul.f32 %v988, %v465
      %v993 = vpack.c.bf16 %v991, %v989
      %v994 = vpack.c.bf16 %v992, %v990
      %995 = vrot.lane.b32.xlu0 %v899, 113
      %v996 = vpop.permute.xlu0 %995
      %997 = vrot.lane.b32.xlu0 %v901, 113
      %v998 = vpop.permute.xlu0 %997
      %999 = vrot.lane.b32.xlu0 %v900, 113
      %v1000 = vpop.permute.xlu0 %999
      %1001 = vrot.lane.b32.xlu0 %v902, 113
      %v1002 = vpop.permute.xlu0 %1001
      %v1003 = vsel %vm482, %v996, %v1000
      %v1004 = vsel %vm482, %v998, %v1002
      %v1005 = vsel %vm482, %v1000, %v996
      %v1006 = vsel %vm482, %v1002, %v998
      %v1007 = vmul.f32 %v1003, %v493
      %v1008 = vmul.f32 %v1005, %v497
      %v1009 = vmul.f32 %v1004, %v493
      %v1010 = vmul.f32 %v1006, %v497
      %v1011 = vpack.c.bf16 %v1009, %v1007
      %v1012 = vpack.c.bf16 %v1010, %v1008
      %1013 = vrot.lane.b32.xlu0 %v899, 112
      %v1014 = vpop.permute.xlu0 %1013
      %1015 = vrot.lane.b32.xlu0 %v901, 112
      %v1016 = vpop.permute.xlu0 %1015
      %1017 = vrot.lane.b32.xlu0 %v900, 112
      %v1018 = vpop.permute.xlu0 %1017
      %1019 = vrot.lane.b32.xlu0 %v902, 112
      %v1020 = vpop.permute.xlu0 %1019
      %v1021 = vsel %vm514, %v1014, %v1018
      %v1022 = vsel %vm514, %v1016, %v1020
      %v1023 = vsel %vm514, %v1018, %v1014
      %v1024 = vsel %vm514, %v1020, %v1016
      %v1025 = vmul.f32 %v1021, %v525
      %v1026 = vmul.f32 %v1023, %v529
      %v1027 = vmul.f32 %v1022, %v525
      %v1028 = vmul.f32 %v1024, %v529
      %v1029 = vpack.c.bf16 %v1027, %v1025
      %v1030 = vpack.c.bf16 %v1028, %v1026
      %1031 = vrot.lane.b32.xlu0 %v899, 111
      %v1032 = vpop.permute.xlu0 %1031
      %1033 = vrot.lane.b32.xlu0 %v901, 111
      %v1034 = vpop.permute.xlu0 %1033
      %1035 = vrot.lane.b32.xlu0 %v900, 111
      %v1036 = vpop.permute.xlu0 %1035
      %1037 = vrot.lane.b32.xlu0 %v902, 111
      %v1038 = vpop.permute.xlu0 %1037
      %v1039 = vsel %vm546, %v1032, %v1036
      %v1040 = vsel %vm546, %v1034, %v1038
      %v1041 = vsel %vm546, %v1036, %v1032
      %v1042 = vsel %vm546, %v1038, %v1034
      %v1043 = vmul.f32 %v1039, %v557
      %v1044 = vmul.f32 %v1041, %v561
      %v1045 = vmul.f32 %v1040, %v557
      %v1046 = vmul.f32 %v1042, %v561
      %v1047 = vpack.c.bf16 %v1045, %v1043
      %v1048 = vpack.c.bf16 %v1046, %v1044
      %v1049 = vld [vmem:[%s4] sm:$0xff]
      %v1050 = vld [vmem:[%s4 + $0x8] sm:$0xff]
      %v1051 = vld [vmem:[%s7] sm:$0xff]
      %v1052 = vld [vmem:[%s7 + $0x8] sm:$0xff]
      %1054 = vset.pattern.permute.xlu0 0
      %1055 = vperm.xlu0 %1054, %v1051
      %v1056 = vpop.permute.xlu0 %1055
      %1059 = vset.pattern.permute.xlu0 0
      %1060 = vperm.xlu0 %1059, %v1052
      %v1061 = vpop.permute.xlu0 %1060
      %v1065 = vunpack.c.l.b16 %v1049
      %v1066 = vunpack.c.h.b16 %v1049
      %v1067 = vunpack.c.l.b16 %v1050
      %v1068 = vunpack.c.h.b16 %v1050
      %v1069 = vpack.c.b16 %v1067, %v1065
      %v1070 = vpack.c.b16 %v1068, %v1066
      %v1073 = vsel %vm593, %v1070, 0
      %1075 = vmatprep.subr.bf16.mxu0 %v920
      %1076 = vmatpush1.bf16.msra.mxu0 %v919
      %1077 = vmatprep.subr.bf16.mxu0 %v938
      %1078 = vmatpush1.bf16.msra.mxu0 %v937
      %1079 = vmatprep.subr.bf16.mxu0 %v956
      %1080 = vmatpush1.bf16.msra.mxu0 %v955
      %1081 = vmatprep.subr.bf16.mxu0 %v974
      %1082 = vmatpush1.bf16.msra.mxu0 %v973
      %1083 = vmatprep.subr.bf16.mxu0 %v976
      %1084 = vmatpush1.bf16.msra.mxu0 %v975
      %1085 = vmatprep.subr.bf16.mxu0 %v994
      %1086 = vmatpush1.bf16.msra.mxu0 %v993
      %1087 = vmatprep.subr.bf16.mxu0 %v1012
      %1088 = vmatpush1.bf16.msra.mxu0 %v1011
      %1089 = vmatprep.subr.bf16.mxu0 %v1030
      %1090 = vmatpush1.bf16.msra.mxu0 %v1029
      %1091 = vmatprep.subr.bf16.mxu0 %v1048
      %1092 = vmatpush1.bf16.msra.mxu0 %v1047
      %1093 = vmatprep.subr.bf16.mxu0 0
      %1094 = vmatpush1.bf16.msra.mxu0 0
      %1095 = vmatprep.subr.bf16.mxu0 0
      %1096 = vmatpush1.bf16.msra.mxu0 0
      %1097 = vmatprep.subr.bf16.mxu0 0
      %1098 = vmatpush1.bf16.msra.mxu0 0
      %1099 = vmatprep.subr.bf16.mxu0 0
      %1100 = vmatpush1.bf16.msra.mxu0 0
      %1101 = vmatprep.subr.bf16.mxu0 0
      %1102 = vmatpush1.bf16.msra.mxu0 0
      %1103 = vmatprep.subr.bf16.mxu0 0
      %1104 = vmatpush1.bf16.msra.mxu0 0
      %1105 = vmatprep.subr.bf16.mxu0 0
      %1106 = vmatpush1.bf16.msra.mxu0 0
      %1107 = vmatprep.mubr.bf16.mxu0 %v1073
      %1108 = vmatmul.mubr.bf16.gmra.mrb[0].mxu0 %v1069
      %v1109 = vpop.f32.mrb[0].mxu0
      %v1110 = vadd.f32 %v1056, %v1109
      %v1111 = vpop.f32.mrb[0].mxu0
      %v1112 = vadd.f32 %v1056, %v1111
      %v1113 = vpop.f32.mrb[0].mxu0
      %v1114 = vadd.f32 %v1061, %v1113
      %v1115 = vpop.f32.mrb[0].mxu0
      %v1116 = vadd.f32 %v1061, %v1115
      %1117 = vdwg.mxu0
      %v1118 = vmax.f32 %v1110, 0.0
      %v1119 = vmax.f32 %v1112, 0.0
      %v1120 = vmax.f32 %v1114, 0.0
      %v1121 = vmax.f32 %v1116, 0.0
      %v1122 = vadd.f32 %v895, %v1118
      %v1123 = vadd.f32 %v896, %v1119
      %v1124 = vadd.f32 %v897, %v1120
      %v1125 = vadd.f32 %v898, %v1121
      %1126 = vst [vmem:[%s305] sm:$0xff] %v1122
      %1127 = vst [vmem:[%s305 + $0x8] sm:$0xff] %v1123
      %1128 = vst [vmem:[%s305 + $0x10] sm:$0xff] %v1124
      %1129 = vst [vmem:[%s305 + $0x18] sm:$0xff] %v1125
      %p1130 = scmp.lt.s32.totalorder %s19, 1
      %s1131 = scalar_select %p1130, %s19, 1
      %s1132 = smul.addr %s1131, 4
      %s1133 = smul.addr %s1132, 8
      %s1134 = scalar_lea.vmem %s8, %s1133
      // Predicated region
      $region53: #{context_module_forward.1} parent=51 // pred_check
        %p1135 = pneg %p210
      $region54: #{context_module_forward.1} parent=51 // pred_check_branch
        %1137 = sbr.rel (%p1135) target = $region56
      $region55: #{context_module_forward.1} parent=51 // pred_region
        _
      $region56: #{context_module_forward.1} parent=51 // pred_fallthru
        _
    $region52: #{context_module_forward.1} parent=5 // pred_fallthru
      _
    %p1138 = scmp.le.s32.totalorder 2, %s14
    // Predicated region
    $region57: #{context_module_forward.1} parent=5 // pred_check
      %p1139 = pneg %p1138
    $region58: #{context_module_forward.1} parent=5 // pred_check_branch
      %1141 = sbr.rel (%p1139) target = $region60
    $region59: #{context_module_forward.1} parent=5 // pred_region
      %s1142 = ssub.s32 %s14, 2
      // Predicated region
      $region61: #{context_module_forward.1} parent=59 // pred_check
        %p1143 = pneg %p216
      $region62: #{context_module_forward.1} parent=59 // pred_check_branch
        %1145 = sbr.rel (%p1143) target = $region64
      $region63: #{context_module_forward.1} parent=59 // pred_region
        %p1146 = scmp.lt.s32.totalorder %s20, 1
        %s1147 = scalar_select %p1146, %s20, 1
        %s1148 = smul.addr %s1147, 4
        %s1149 = smul.addr %s1148, 8
        %s1150 = scalar_lea.vmem %s8, %s1149
      $region64: #{context_module_forward.1} parent=59 // pred_fallthru
        _
    $region60: #{context_module_forward.1} parent=5 // pred_fallthru
      _
  $region6: #{context_module_forward.1} parent=0 // loop_footer
    %s18 = sadd.s32 1, %s14
  $region7: #{context_module_forward.1} parent=0 // loop_footer_branch
    %13 = sbr.rel target = $region3
  $region8: #{context_module_forward.1} parent=0 // loop_exit
    _

</llo_original>
